<compile_context>
chip_gen: v7x
topology: tpu7x:2x2x1
jax: 0.10.0
libtpu: 0.0.40
codegen_flags: <defaults>
</compile_context>

<pallas_src>
import math
import numpy as np
import jax
import jax.numpy as jnp
from jax.experimental import pallas as pl
from jax.experimental.pallas import tpu as pltpu

# ---- hyperparameters (from the PyTorch module) -------------------------------
d_k = d_v = 16
d_model = 64
n_heads = 4
d_ff = 512
n_layers = 6
tgt_vocab_size = 36
src_vocab_size = 34
degree_vocab_size = 8
distance_vocab_size = 83
LN_EPS = 1e-5
NEG_INF = -1e9
V_PAD = 128                     # lane-dense padded width for logits / MLP head
VMEM_LIMIT = 32 * 1024 * 1024


def _nbytes(*arrays):
    return int(sum(int(a.size) * a.dtype.itemsize for a in arrays))


def _attn_flops(Lq, Lk):
    return 2 * n_heads * (Lq * d_model * d_k + 2 * Lk * d_model * d_k
                          + 2 * Lq * Lk * d_k + Lq * d_k * d_model)


def _ffn_flops(L):
    return 4 * L * d_model * d_ff


# ---- shared in-kernel helpers -------------------------------------------------
def _layernorm(x):
    # nn.LayerNorm(d_model) freshly constructed in forward -> gamma=1, beta=0
    mean = jnp.mean(x, axis=-1, keepdims=True)
    var = jnp.mean((x - mean) ** 2, axis=-1, keepdims=True)
    return (x - mean) * jax.lax.rsqrt(var + LN_EPS)


def _attn_block(xq, xkv, wq, wk, wv, wo, bias):
    """Multi-head attention + residual + LayerNorm for one batch element.

    xq:   [Lq, D] f32      residual / query activations
    xkv:  [Lk, D] f32      key/value source activations
    wq/wk/wv: [H, D, dk]   bf16 per-head projection weights (heads leading)
    wo:   [H, dv, D]       bf16 per-head output projection
    bias: [H, Lq, Lk] f32  additive bias (mask / MD bias folded in)
    returns (LayerNorm(out + xq) [Lq, D] f32, probs [H, Lq, Lk] f32)
    """
    Lq = xq.shape[0]
    Lk = xkv.shape[0]
    xq_b = jnp.broadcast_to(xq.astype(jnp.bfloat16)[None], (n_heads, Lq, d_model))
    xkv_b = jnp.broadcast_to(xkv.astype(jnp.bfloat16)[None], (n_heads, Lk, d_model))
    # heads on a leading batch axis -> no lane slices / concats / transposes
    q = jnp.einsum('hqd,hdk->hqk', xq_b, wq, preferred_element_type=jnp.float32)
    k = jnp.einsum('hnd,hdk->hnk', xkv_b, wk, preferred_element_type=jnp.float32)
    v = jnp.einsum('hnd,hdk->hnk', xkv_b, wv, preferred_element_type=jnp.float32)
    s = jnp.einsum('hqk,hnk->hqn', q.astype(jnp.bfloat16), k.astype(jnp.bfloat16),
                   preferred_element_type=jnp.float32)
    s = s * jnp.float32(1.0 / math.sqrt(d_k)) + bias
    m = jnp.max(s, axis=-1, keepdims=True)
    e = jnp.exp(s - m)
    p = e * pl.reciprocal(jnp.sum(e, axis=-1, keepdims=True), approx=True)
    ctx = jnp.einsum('hqn,hnk->hqk', p.astype(jnp.bfloat16), v.astype(jnp.bfloat16),
                     preferred_element_type=jnp.float32)
    o = jnp.einsum('hqk,hkd->hqd', ctx.astype(jnp.bfloat16), wo,
                   preferred_element_type=jnp.float32)
    out = jnp.sum(o, axis=0) + xq
    return _layernorm(out), p


def _ffn_block(x, w1, w2):
    xb = x.astype(jnp.bfloat16)
    h = jnp.maximum(jnp.dot(xb, w1, preferred_element_type=jnp.float32), 0.0)
    y = jnp.dot(h.astype(jnp.bfloat16), w2, preferred_element_type=jnp.float32) + x
    return _layernorm(y)


# ---- fused 6-layer encoder stack (one pallas_call, grid = (B, n_layers)) -------
def enc_stack_kernel(x_ref, bias_ref, wq_ref, wk_ref, wv_ref, wo_ref, w1_ref, w2_ref,
                     out_ref, attn_ref, xs_ref):
    l = pl.program_id(1)

    @pl.when(l == 0)
    def _():
        xs_ref[...] = x_ref[0]          # load this batch's input into the carry

    x = xs_ref[...]                      # [Ls, D] f32
    x1, probs = _attn_block(x, x, wq_ref[l], wk_ref[l], wv_ref[l], wo_ref[l],
                            bias_ref[0])
    attn_ref[0, 0] = probs
    x2 = _ffn_block(x1, w1_ref[l], w2_ref[l])
    xs_ref[...] = x2                     # carry to next layer
    out_ref[0] = x2                      # unconditional; last layer's value survives


def encoder_stack(x, enc_bias, w):
    B, Ls, _ = x.shape
    flops = B * n_layers * (_attn_flops(Ls, Ls) + _ffn_flops(Ls))
    transc = B * n_layers * (n_heads * Ls * Ls + 2 * Ls)
    out_bytes = (B * Ls * d_model + n_layers * B * n_heads * Ls * Ls) * 4
    bytes_accessed = _nbytes(x, enc_bias, *w.values()) + out_bytes
    return pl.pallas_call(
        enc_stack_kernel,
        grid=(B, n_layers),
        in_specs=[
            pl.BlockSpec((1, Ls, d_model), lambda b, l: (b, 0, 0)),
            pl.BlockSpec((1, n_heads, Ls, Ls), lambda b, l: (b, 0, 0, 0)),
            # full weight stacks, resident in VMEM (invariant blocks)
            pl.BlockSpec((n_layers, n_heads, d_model, d_k), lambda b, l: (0, 0, 0, 0)),
            pl.BlockSpec((n_layers, n_heads, d_model, d_k), lambda b, l: (0, 0, 0, 0)),
            pl.BlockSpec((n_layers, n_heads, d_model, d_v), lambda b, l: (0, 0, 0, 0)),
            pl.BlockSpec((n_layers, n_heads, d_v, d_model), lambda b, l: (0, 0, 0, 0)),
            pl.BlockSpec((n_layers, d_model, d_ff), lambda b, l: (0, 0, 0)),
            pl.BlockSpec((n_layers, d_ff, d_model), lambda b, l: (0, 0, 0)),
        ],
        out_specs=(
            pl.BlockSpec((1, Ls, d_model), lambda b, l: (b, 0, 0)),
            pl.BlockSpec((1, 1, n_heads, Ls, Ls), lambda b, l: (l, b, 0, 0, 0)),
        ),
        out_shape=(
            jax.ShapeDtypeStruct((B, Ls, d_model), jnp.float32),
            jax.ShapeDtypeStruct((n_layers, B, n_heads, Ls, Ls), jnp.float32),
        ),
        scratch_shapes=[pltpu.VMEM((Ls, d_model), jnp.float32)],
        compiler_params=pltpu.CompilerParams(
            dimension_semantics=("parallel", "arbitrary"),
            vmem_limit_bytes=VMEM_LIMIT),
        cost_estimate=pl.CostEstimate(flops=int(flops), transcendentals=int(transc),
                                      bytes_accessed=int(bytes_accessed)),
    )(x, enc_bias, w['wq'], w['wk'], w['wv'], w['wo'], w['w1'], w['w2'])


# ---- fused 6-layer decoder stack + vocab projection (one pallas_call) ----------
def dec_stack_kernel(x_ref, enc_ref, sbias_ref, cbias_ref,
                     swq_ref, swk_ref, swv_ref, swo_ref,
                     cwq_ref, cwk_ref, cwv_ref, cwo_ref,
                     w1_ref, w2_ref, projw_ref,
                     out_ref, sattn_ref, cattn_ref, logits_ref, xs_ref):
    l = pl.program_id(1)

    @pl.when(l == 0)
    def _():
        xs_ref[...] = x_ref[0]

    x = xs_ref[...]                      # [Lt, D] f32
    enc = enc_ref[0]                     # [Ls, D] f32
    # masked self-attention
    x1, sp = _attn_block(x, x, swq_ref[l], swk_ref[l], swv_ref[l], swo_ref[l],
                         sbias_ref[0])
    sattn_ref[0, 0] = sp
    # encoder-decoder cross attention
    x2, cp = _attn_block(x1, enc, cwq_ref[l], cwk_ref[l], cwv_ref[l], cwo_ref[l],
                         cbias_ref[0])
    cattn_ref[0, 0] = cp
    # position-wise FFN
    x3 = _ffn_block(x2, w1_ref[l], w2_ref[l])
    xs_ref[...] = x3
    out_ref[0] = x3
    # lane-dense (128-wide padded) vocab projection; tiny, done every step so
    # the last layer's value is what gets written back (no revisit fragility)
    logits_ref[0] = jnp.dot(x3.astype(jnp.bfloat16), projw_ref[...],
                            preferred_element_type=jnp.float32)


def decoder_stack(dx, enc_out, sbias, cbias, w, projw_pad):
    B, Lt, _ = dx.shape
    Ls = enc_out.shape[1]
    flops = B * n_layers * (_attn_flops(Lt, Lt) + _attn_flops(Lt, Ls)
                            + _ffn_flops(Lt) + 2 * Lt * d_model * V_PAD)
    transc = B * n_layers * (n_heads * Lt * Lt + n_heads * Lt * Ls + 3 * Lt)
    out_bytes = (B * Lt * (d_model + V_PAD)
                 + n_layers * B * n_heads * (Lt * Lt + Lt * Ls)) * 4
    bytes_accessed = _nbytes(dx, enc_out, sbias, cbias, projw_pad, *w.values()) + out_bytes
    return pl.pallas_call(
        dec_stack_kernel,
        grid=(B, n_layers),
        in_specs=[
            pl.BlockSpec((1, Lt, d_model), lambda b, l: (b, 0, 0)),
            pl.BlockSpec((1, Ls, d_model), lambda b, l: (b, 0, 0)),
            pl.BlockSpec((1, n_heads, Lt, Lt), lambda b, l: (b, 0, 0, 0)),
            pl.BlockSpec((1, n_heads, Lt, Ls), lambda b, l: (b, 0, 0, 0)),
            pl.BlockSpec((n_layers, n_heads, d_model, d_k), lambda b, l: (0, 0, 0, 0)),
            pl.BlockSpec((n_layers, n_heads, d_model, d_k), lambda b, l: (0, 0, 0, 0)),
            pl.BlockSpec((n_layers, n_heads, d_model, d_v), lambda b, l: (0, 0, 0, 0)),
            pl.BlockSpec((n_layers, n_heads, d_v, d_model), lambda b, l: (0, 0, 0, 0)),
            pl.BlockSpec((n_layers, n_heads, d_model, d_k), lambda b, l: (0, 0, 0, 0)),
            pl.BlockSpec((n_layers, n_heads, d_model, d_k), lambda b, l: (0, 0, 0, 0)),
            pl.BlockSpec((n_layers, n_heads, d_model, d_v), lambda b, l: (0, 0, 0, 0)),
            pl.BlockSpec((n_layers, n_heads, d_v, d_model), lambda b, l: (0, 0, 0, 0)),
            pl.BlockSpec((n_layers, d_model, d_ff), lambda b, l: (0, 0, 0)),
            pl.BlockSpec((n_layers, d_ff, d_model), lambda b, l: (0, 0, 0)),
            pl.BlockSpec((d_model, V_PAD), lambda b, l: (0, 0)),
        ],
        out_specs=(
            pl.BlockSpec((1, Lt, d_model), lambda b, l: (b, 0, 0)),
            pl.BlockSpec((1, 1, n_heads, Lt, Lt), lambda b, l: (l, b, 0, 0, 0)),
            pl.BlockSpec((1, 1, n_heads, Lt, Ls), lambda b, l: (l, b, 0, 0, 0)),
            pl.BlockSpec((1, Lt, V_PAD), lambda b, l: (b, 0, 0)),
        ),
        out_shape=(
            jax.ShapeDtypeStruct((B, Lt, d_model), jnp.float32),
            jax.ShapeDtypeStruct((n_layers, B, n_heads, Lt, Lt), jnp.float32),
            jax.ShapeDtypeStruct((n_layers, B, n_heads, Lt, Ls), jnp.float32),
            jax.ShapeDtypeStruct((B, Lt, V_PAD), jnp.float32),
        ),
        scratch_shapes=[pltpu.VMEM((Lt, d_model), jnp.float32)],
        compiler_params=pltpu.CompilerParams(
            dimension_semantics=("parallel", "arbitrary"),
            vmem_limit_bytes=VMEM_LIMIT),
        cost_estimate=pl.CostEstimate(flops=int(flops), transcendentals=int(transc),
                                      bytes_accessed=int(bytes_accessed)),
    )(dx, enc_out, sbias, cbias,
      w['swq'], w['swk'], w['swv'], w['swo'],
      w['cwq'], w['cwk'], w['cwv'], w['cwo'],
      w['w1'], w['w2'], projw_pad)


# ---- fused MLP head + BCEWithLogits loss kernel ---------------------------------
def mlp_bce_kernel(x_ref, y_ref, w1_ref, b1_ref, w2_ref, b2_ref, w3_ref, b3_ref,
                   out_ref, loss_ref):
    x = x_ref[...].astype(jnp.bfloat16)                               # [P, 128]
    h1 = jnp.maximum(jnp.dot(x, w1_ref[...], preferred_element_type=jnp.float32)
                     + b1_ref[...], 0.0)
    h2 = jnp.maximum(jnp.dot(h1.astype(jnp.bfloat16), w2_ref[...],
                             preferred_element_type=jnp.float32) + b2_ref[...], 0.0)
    logits = jnp.dot(h2.astype(jnp.bfloat16), w3_ref[...],
                     preferred_element_type=jnp.float32) + b3_ref[...]
    out_ref[...] = logits                                             # [P, 128] lane-dense
    y = y_ref[...]
    # numerically-stable BCEWithLogits, mean over the real (first 2) columns
    l = jnp.maximum(logits, 0.0) - logits * y + jnp.log1p(jnp.exp(-jnp.abs(logits)))
    col = jax.lax.broadcasted_iota(jnp.int32, l.shape, 1)
    l = jnp.where(col < 2, l, 0.0)
    loss_ref[0, 0] = jnp.sum(l) * jnp.float32(1.0 / (l.shape[0] * 2))


def mlp_bce(x, onehot_pad, p):
    P = x.shape[0]
    w1 = p['w1'].astype(jnp.bfloat16)
    w2 = p['w2'].astype(jnp.bfloat16)
    w3p = jnp.zeros((32, V_PAD), jnp.float32).at[:, :2].set(p['w3']).astype(jnp.bfloat16)
    b3p = jnp.zeros((1, V_PAD), jnp.float32).at[:, :2].set(p['b3'])
    flops = 2 * P * (2 * d_model * 512 + 512 * 32 + 32 * V_PAD)
    bytes_accessed = _nbytes(x, onehot_pad, w1, w2, w3p, p['b1'], p['b2'], b3p) + P * V_PAD * 4
    logits_pad, loss = pl.pallas_call(
        mlp_bce_kernel,
        out_shape=(
            jax.ShapeDtypeStruct((P, V_PAD), jnp.float32),
            jax.ShapeDtypeStruct((1, 1), jnp.float32),
        ),
        out_specs=(
            pl.BlockSpec(memory_space=pltpu.MemorySpace.VMEM),
            pl.BlockSpec(memory_space=pltpu.MemorySpace.SMEM),   # scalar loss -> SMEM
        ),
        compiler_params=pltpu.CompilerParams(vmem_limit_bytes=VMEM_LIMIT),
        cost_estimate=pl.CostEstimate(flops=int(flops), transcendentals=int(2 * P * V_PAD),
                                      bytes_accessed=int(bytes_accessed)),
    )(x, onehot_pad, w1, p['b1'], w2, p['b2'], w3p, b3p)
    return logits_pad[:, :2], loss[0, 0]


# ---- glue: positional encoding / mask + bias construction -----------------------
def positional_encoding(L, D):
    position = np.arange(L, dtype=np.float32)[:, None]
    div_term = np.exp(np.arange(0, D, 2, dtype=np.float32) * (-math.log(10000.0) / D))
    pe = np.zeros((L, D), dtype=np.float32)
    pe[:, 0::2] = np.sin(position * div_term)
    pe[:, 1::2] = np.cos(position * div_term)
    return jnp.asarray(pe)


# ---- deterministic parameter init ----------------------------------------------
def init_params(key):
    keys = iter(jax.random.split(key, 64))

    def nrm(shape, scale=0.05):
        return (scale * jax.random.normal(next(keys), shape)).astype(jnp.float32)

    params = {}
    params['src_emb'] = nrm((src_vocab_size, d_model), 0.1).at[0].set(0.0)
    params['degree_emb'] = nrm((degree_vocab_size, d_model), 0.1).at[7].set(0.0)
    params['MD_emb'] = nrm((distance_vocab_size, n_heads), 0.1).at[82].set(0.0)
    params['tgt_emb'] = nrm((tgt_vocab_size, d_model), 0.1).at[0].set(0.0)

    # per-layer weights stacked on a leading layer axis; heads on a leading axis
    params['enc'] = dict(
        wq=nrm((n_layers, n_heads, d_model, d_k)),
        wk=nrm((n_layers, n_heads, d_model, d_k)),
        wv=nrm((n_layers, n_heads, d_model, d_v)),
        wo=nrm((n_layers, n_heads, d_v, d_model)),
        w1=nrm((n_layers, d_model, d_ff)),
        w2=nrm((n_layers, d_ff, d_model)),
    )
    params['dec'] = dict(
        swq=nrm((n_layers, n_heads, d_model, d_k)),
        swk=nrm((n_layers, n_heads, d_model, d_k)),
        swv=nrm((n_layers, n_heads, d_model, d_v)),
        swo=nrm((n_layers, n_heads, d_v, d_model)),
        cwq=nrm((n_layers, n_heads, d_model, d_k)),
        cwk=nrm((n_layers, n_heads, d_model, d_k)),
        cwv=nrm((n_layers, n_heads, d_model, d_v)),
        cwo=nrm((n_layers, n_heads, d_v, d_model)),
        w1=nrm((n_layers, d_model, d_ff)),
        w2=nrm((n_layers, d_ff, d_model)),
    )
    params['proj_w'] = nrm((d_model, tgt_vocab_size))
    params['mlp'] = dict(
        w1=nrm((2 * d_model, 512)), b1=nrm((1, 512), 0.01),
        w2=nrm((512, 32)), b2=nrm((1, 32), 0.01),
        w3=nrm((32, 2)), b3=nrm((1, 2), 0.01),
    )
    return params


# ---- full forward pass -----------------------------------------------------------
def transformer_forward(params, enc_inputs, dec_inputs, degree_s, MD, MA_np):
    B, src_len = enc_inputs.shape
    tgt_len = dec_inputs.shape[1]
    pe_src = positional_encoding(src_len, d_model)
    pe_tgt = positional_encoding(tgt_len, d_model)

    # ----- Encoder -----
    enc_x = params['src_emb'][enc_inputs] + params['degree_emb'][degree_s] + pe_src[None]
    # TODO(synk): dropout (p=0.1) in PositionalEncoding is omitted (inference semantics).
    key_pad = (enc_inputs == 0)                                          # [B, Ls]
    enc_mask = jnp.broadcast_to(key_pad[:, None, :], (B, src_len, src_len))
    MD_bias = jnp.transpose(params['MD_emb'][MD], (0, 3, 1, 2))          # [B, H, Ls, Ls]
    enc_bias = jnp.where(enc_mask[:, None, :, :], jnp.float32(NEG_INF), MD_bias)

    enc_w = {k: v.astype(jnp.bfloat16) for k, v in params['enc'].items()}
    enc_out, enc_attn = encoder_stack(enc_x.astype(jnp.float32), enc_bias, enc_w)

    # ----- Decoder -----
    dec_x = params['tgt_emb'][dec_inputs] + pe_tgt[None]
    dpad = (dec_inputs == 0)
    dmask = jnp.broadcast_to(dpad[:, None, :], (B, tgt_len, tgt_len)).astype(jnp.int32)
    sub = jnp.triu(jnp.ones((tgt_len, tgt_len), jnp.int32), k=1)
    smask = (dmask + sub[None]) > 0
    sbias = jnp.broadcast_to(
        jnp.where(smask, jnp.float32(NEG_INF), 0.0)[:, None],
        (B, n_heads, tgt_len, tgt_len))
    cmask = jnp.broadcast_to(key_pad[:, None, :], (B, tgt_len, src_len))
    cbias = jnp.broadcast_to(
        jnp.where(cmask, jnp.float32(NEG_INF), 0.0)[:, None],
        (B, n_heads, tgt_len, src_len))

    dec_w = {k: v.astype(jnp.bfloat16) for k, v in params['dec'].items()}
    projw_pad = jnp.zeros((d_model, V_PAD), jnp.float32).at[:, :tgt_vocab_size].set(
        params['proj_w']).astype(jnp.bfloat16)

    dec_out, sattn_raw, cattn_raw, logits_pad = decoder_stack(
        dec_x.astype(jnp.float32), enc_out, sbias, cbias, dec_w, projw_pad)

    enc_self_attns = [enc_attn[l] for l in range(n_layers)]
    dec_self_attns = [sattn_raw[l] for l in range(n_layers)]
    dec_enc_attns = [cattn_raw[l] for l in range(n_layers)]

    # ----- pair extraction from MA (host-side, mirrors the PyTorch python loop) -----
    n_idx, i_idx, j_idx, t_vals = [], [], [], []
    for n in range(B):
        num_t = list(MA_np[n][0]).index(2)
        for i in range(num_t):
            for j in range(i + 1, num_t):
                n_idx.append(n); i_idx.append(i + 1); j_idx.append(j + 1)
        for i in range(num_t - 1):
            t_vals.extend(list(MA_np[n][i][i + 1:num_t]))
    n_idx = np.asarray(n_idx); i_idx = np.asarray(i_idx); j_idx = np.asarray(j_idx)
    a1 = dec_out[n_idx, i_idx]
    a2 = dec_out[n_idx, j_idx]
    mlp_input = jnp.concatenate([a1, a2], axis=-1)                       # [P, 2*d_model]
    target = np.asarray([0 if int(v) == -1 else int(v) for v in t_vals], dtype=np.int64)
    onehot = np.zeros((len(target), V_PAD), dtype=np.float32)
    onehot[np.arange(len(target)), target] = 1.0
    onehot_pad = jnp.asarray(onehot)                                     # [P, 128] padded

    mlp_output, sum_loss = mlp_bce(mlp_input, onehot_pad, params['mlp'])

    dec_logits = logits_pad.reshape(B * tgt_len, V_PAD)[:, :tgt_vocab_size]

    return (dec_logits, enc_self_attns, dec_self_attns, dec_enc_attns,
            mlp_output, sum_loss)


# ---- main ------------------------------------------------------------------------
if __name__ == "__main__":
    B, src_len, tgt_len = 2, 8, 8
    key = jax.random.PRNGKey(0)
    kp, k1, k2, k3, k4 = jax.random.split(key, 5)

    params = init_params(kp)

    enc_inputs = jax.random.randint(k1, (B, src_len), 1, src_vocab_size, dtype=jnp.int32)
    enc_inputs = enc_inputs.at[:, -2:].set(0)                           # padding tokens
    degree_s = jax.random.randint(k2, (B, src_len), 0, 7, dtype=jnp.int32)
    degree_s = degree_s.at[:, -2:].set(7)                               # degree pad idx
    dec_inputs = jax.random.randint(k3, (B, tgt_len), 1, tgt_vocab_size, dtype=jnp.int32)
    dec_inputs = dec_inputs.at[:, 0].set(27)                            # 'sos'
    dec_inputs = dec_inputs.at[:, -1].set(0)                            # pad
    MD = jax.random.randint(k4, (B, src_len, src_len), 0, 81, dtype=jnp.int32)
    MD = MD.at[:, -2:, :].set(82).at[:, :, -2:].set(82)                 # distance pad idx

    # adjacency-style MA matrix with a '2' marker on row 0 at position num_t
    MA = np.zeros((B, tgt_len, tgt_len), dtype=np.int32)
    num_ts = [5, 4]
    rng = np.random.RandomState(0)
    for n, nt in enumerate(num_ts):
        for i in range(nt):
            for j in range(i + 1, nt):
                MA[n, i, j] = rng.randint(-1, 2)
        MA[n, 0, nt] = 2

    outs = transformer_forward(params, enc_inputs, dec_inputs, degree_s, MD, MA)
    jax.block_until_ready(outs)
    print("KERNEL_OK")
</pallas_src>

<mosaic_0001>
module attributes {stable_mosaic.version = 11 : i64} {
  func.func @enc_stack_kernel(%arg0: i32, %arg1: i32, %arg2: memref<1x8x64xf32, #tpu.memory_space<vmem>>, %arg3: memref<1x4x8x8xf32, #tpu.memory_space<vmem>>, %arg4: memref<6x4x64x16xbf16, #tpu.memory_space<vmem>>, %arg5: memref<6x4x64x16xbf16, #tpu.memory_space<vmem>>, %arg6: memref<6x4x64x16xbf16, #tpu.memory_space<vmem>>, %arg7: memref<6x4x16x64xbf16, #tpu.memory_space<vmem>>, %arg8: memref<6x64x512xbf16, #tpu.memory_space<vmem>>, %arg9: memref<6x512x64xbf16, #tpu.memory_space<vmem>>, %arg10: memref<1x8x64xf32, #tpu.memory_space<vmem>>, %arg11: memref<1x1x4x8x8xf32, #tpu.memory_space<vmem>>, %arg12: memref<8x64xf32, #tpu.memory_space<vmem>>) attributes {dimension_semantics = [#tpu.dimension_semantics<parallel>, #tpu.dimension_semantics<arbitrary>], iteration_bounds = array<i64: 2, 6>, scalar_prefetch = 0 : i64, scratch_operands = 1 : i64, tpu.core_type = #tpu.core_type<tc>, window_params = [{transform_indices = @transform_0, window_bounds = array<i64: 1, 8, 64>}, {transform_indices = @transform_1, window_bounds = array<i64: 1, 4, 8, 8>}, {pipeline_mode = #tpu.pipeline_mode<synchronous>, transform_indices = @transform_2, window_bounds = array<i64: 6, 4, 64, 16>}, {pipeline_mode = #tpu.pipeline_mode<synchronous>, transform_indices = @transform_3, window_bounds = array<i64: 6, 4, 64, 16>}, {pipeline_mode = #tpu.pipeline_mode<synchronous>, transform_indices = @transform_4, window_bounds = array<i64: 6, 4, 64, 16>}, {pipeline_mode = #tpu.pipeline_mode<synchronous>, transform_indices = @transform_5, window_bounds = array<i64: 6, 4, 16, 64>}, {pipeline_mode = #tpu.pipeline_mode<synchronous>, transform_indices = @transform_6, window_bounds = array<i64: 6, 64, 512>}, {pipeline_mode = #tpu.pipeline_mode<synchronous>, transform_indices = @transform_7, window_bounds = array<i64: 6, 512, 64>}, {transform_indices = @transform_8, window_bounds = array<i64: 1, 8, 64>}, {transform_indices = @transform_9, window_bounds = array<i64: 1, 1, 4, 8, 8>}]} {
    %c0_i32 = arith.constant 0 : i32
    %0 = arith.cmpi eq, %arg1, %c0_i32 : i32
    %1 = arith.extui %0 : i1 to i32
    %c0_i32_0 = arith.constant 0 : i32
    %2 = arith.cmpi ne, %1, %c0_i32_0 : i32
    scf.if %2 {
      %c0_54 = arith.constant 0 : index
      %c0_55 = arith.constant 0 : index
      %c0_56 = arith.constant 0 : index
      %108 = vector.load %arg2[%c0_54, %c0_55, %c0_56] : memref<1x8x64xf32, #tpu.memory_space<vmem>>, vector<1x8x64xf32>
      %109 = vector.shape_cast %108 : vector<1x8x64xf32> to vector<8x64xf32>
      %c0_57 = arith.constant 0 : index
      %c0_58 = arith.constant 0 : index
      %110 = vector.load %arg12[%c0_57, %c0_58] : memref<8x64xf32, #tpu.memory_space<vmem>>, vector<8x64xf32>
      tpu.vector_store %arg12[%c0_57, %c0_58], %109 {strides = array<i32>} : memref<8x64xf32, #tpu.memory_space<vmem>>, vector<8x64xf32>,
    } else {
    }
    %c0 = arith.constant 0 : index
    %c0_1 = arith.constant 0 : index
    %3 = vector.load %arg12[%c0, %c0_1] : memref<8x64xf32, #tpu.memory_space<vmem>>, vector<8x64xf32>
    %4 = arith.index_cast %arg1 : i32 to index
    %c0_2 = arith.constant 0 : index
    %c0_3 = arith.constant 0 : index
    %c0_4 = arith.constant 0 : index
    %5 = vector.load %arg4[%4, %c0_2, %c0_3, %c0_4] : memref<6x4x64x16xbf16, #tpu.memory_space<vmem>>, vector<1x4x64x16xbf16>
    %6 = vector.shape_cast %5 : vector<1x4x64x16xbf16> to vector<4x64x16xbf16>
    %7 = arith.index_cast %arg1 : i32 to index
    %c0_5 = arith.constant 0 : index
    %c0_6 = arith.constant 0 : index
    %c0_7 = arith.constant 0 : index
    %8 = vector.load %arg5[%7, %c0_5, %c0_6, %c0_7] : memref<6x4x64x16xbf16, #tpu.memory_space<vmem>>, vector<1x4x64x16xbf16>
    %9 = vector.shape_cast %8 : vector<1x4x64x16xbf16> to vector<4x64x16xbf16>
    %10 = arith.index_cast %arg1 : i32 to index
    %c0_8 = arith.constant 0 : index
    %c0_9 = arith.constant 0 : index
    %c0_10 = arith.constant 0 : index
    %11 = vector.load %arg6[%10, %c0_8, %c0_9, %c0_10] : memref<6x4x64x16xbf16, #tpu.memory_space<vmem>>, vector<1x4x64x16xbf16>
    %12 = vector.shape_cast %11 : vector<1x4x64x16xbf16> to vector<4x64x16xbf16>
    %13 = arith.index_cast %arg1 : i32 to index
    %c0_11 = arith.constant 0 : index
    %c0_12 = arith.constant 0 : index
    %c0_13 = arith.constant 0 : index
    %14 = vector.load %arg7[%13, %c0_11, %c0_12, %c0_13] : memref<6x4x16x64xbf16, #tpu.memory_space<vmem>>, vector<1x4x16x64xbf16>
    %15 = vector.shape_cast %14 : vector<1x4x16x64xbf16> to vector<4x16x64xbf16>
    %c0_14 = arith.constant 0 : index
    %c0_15 = arith.constant 0 : index
    %c0_16 = arith.constant 0 : index
    %c0_17 = arith.constant 0 : index
    %16 = vector.load %arg3[%c0_14, %c0_15, %c0_16, %c0_17] : memref<1x4x8x8xf32, #tpu.memory_space<vmem>>, vector<1x4x8x8xf32>
    %17 = vector.shape_cast %16 : vector<1x4x8x8xf32> to vector<4x8x8xf32>
    %18 = arith.truncf %3 : vector<8x64xf32> to vector<8x64xbf16>
    %19 = vector.shape_cast %18 : vector<8x64xbf16> to vector<1x8x64xbf16>
    %20 = vector.shape_cast %19 : vector<1x8x64xbf16> to vector<1x8x64xbf16>
    %21 = vector.broadcast %20 : vector<1x8x64xbf16> to vector<4x8x64xbf16>
    %22 = arith.truncf %3 : vector<8x64xf32> to vector<8x64xbf16>
    %23 = vector.shape_cast %22 : vector<8x64xbf16> to vector<1x8x64xbf16>
    %24 = vector.shape_cast %23 : vector<1x8x64xbf16> to vector<1x8x64xbf16>
    %25 = vector.broadcast %24 : vector<1x8x64xbf16> to vector<4x8x64xbf16>
    "tpu.trace_start"() <{level = 10 : i32, message = "hqd,hdk->hqk"}> : () -> ()
    %cst = arith.constant dense<0.000000e+00> : vector<4x8x16xf32>
    %26 = tpu.matmul %21, %6, %cst {dimension_numbers = #tpu.dot_dimension_numbers<[2], [1], [1], [2], [0, 0, 0, 1, 1, 2], [0], [0]>} : vector<4x8x64xbf16>, vector<4x64x16xbf16>, vector<4x8x16xf32> -> vector<4x8x16xf32>
    "tpu.trace_stop"() : () -> ()
    "tpu.trace_start"() <{level = 10 : i32, message = "hnd,hdk->hnk"}> : () -> ()
    %cst_18 = arith.constant dense<0.000000e+00> : vector<4x8x16xf32>
    %27 = tpu.matmul %25, %9, %cst_18 {dimension_numbers = #tpu.dot_dimension_numbers<[2], [1], [1], [2], [0, 0, 0, 1, 1, 2], [0], [0]>} : vector<4x8x64xbf16>, vector<4x64x16xbf16>, vector<4x8x16xf32> -> vector<4x8x16xf32>
    %cst_19 = arith.constant dense<0.000000e+00> : vector<4x8x16xf32>
    %28 = tpu.matmul %25, %12, %cst_19 {dimension_numbers = #tpu.dot_dimension_numbers<[2], [1], [1], [2], [0, 0, 0, 1, 1, 2], [0], [0]>} : vector<4x8x64xbf16>, vector<4x64x16xbf16>, vector<4x8x16xf32> -> vector<4x8x16xf32>
    "tpu.trace_stop"() : () -> ()
    %29 = arith.truncf %26 : vector<4x8x16xf32> to vector<4x8x16xbf16>
    %30 = arith.truncf %27 : vector<4x8x16xf32> to vector<4x8x16xbf16>
    "tpu.trace_start"() <{level = 10 : i32, message = "hqk,hnk->hqn"}> : () -> ()
    %cst_20 = arith.constant dense<0.000000e+00> : vector<4x8x8xf32>
    %31 = tpu.matmul %29, %30, %cst_20 {dimension_numbers = #tpu.dot_dimension_numbers<[2], [2], [1], [1], [0, 0, 0, 1, 1, 1], [0], [0]>} : vector<4x8x16xbf16>, vector<4x8x16xbf16>, vector<4x8x8xf32> -> vector<4x8x8xf32>
    "tpu.trace_stop"() : () -> ()
    %cst_21 = arith.constant 2.500000e-01 : f32
    %32 = vector.broadcast %cst_21 : f32 to vector<4x8x8xf32>
    %33 = arith.mulf %31, %32 : vector<4x8x8xf32>
    %34 = arith.addf %33, %17 : vector<4x8x8xf32>
    %cst_22 = arith.constant dense<0xFF800000> : vector<4x8xf32>
    %35 = vector.multi_reduction <maximumf>, %34, %cst_22 [2] : vector<4x8x8xf32> to vector<4x8xf32>
    %36 = vector.shape_cast %35 : vector<4x8xf32> to vector<4x8x1xf32>
    %37 = vector.broadcast %36 : vector<4x8x1xf32> to vector<4x8x8xf32>
    %38 = arith.subf %34, %37 : vector<4x8x8xf32>
    %39 = math.exp %38 : vector<4x8x8xf32>
    %cst_23 = arith.constant dense<0.000000e+00> : vector<4x8xf32>
    %40 = vector.multi_reduction <add>, %39, %cst_23 [2] : vector<4x8x8xf32> to vector<4x8xf32>
    %41 = vector.shape_cast %40 : vector<4x8xf32> to vector<4x8x1xf32>
    %42 = tpu.reciprocal %41 {approx = true} : vector<4x8x1xf32> -> vector<4x8x1xf32>
    %43 = vector.broadcast %42 : vector<4x8x1xf32> to vector<4x8x8xf32>
    %44 = arith.mulf %39, %43 : vector<4x8x8xf32>
    %45 = arith.truncf %44 : vector<4x8x8xf32> to vector<4x8x8xbf16>
    %46 = arith.truncf %28 : vector<4x8x16xf32> to vector<4x8x16xbf16>
    "tpu.trace_start"() <{level = 10 : i32, message = "hqn,hnk->hqk"}> : () -> ()
    %cst_24 = arith.constant dense<0.000000e+00> : vector<4x8x16xf32>
    %47 = tpu.matmul %45, %46, %cst_24 {dimension_numbers = #tpu.dot_dimension_numbers<[2], [1], [1], [2], [0, 0, 0, 1, 1, 2], [0], [0]>} : vector<4x8x8xbf16>, vector<4x8x16xbf16>, vector<4x8x16xf32> -> vector<4x8x16xf32>
    "tpu.trace_stop"() : () -> ()
    %48 = arith.truncf %47 : vector<4x8x16xf32> to vector<4x8x16xbf16>
    "tpu.trace_start"() <{level = 10 : i32, message = "hqk,hkd->hqd"}> : () -> ()
    %cst_25 = arith.constant dense<0.000000e+00> : vector<4x8x64xf32>
    %49 = tpu.matmul %48, %15, %cst_25 {dimension_numbers = #tpu.dot_dimension_numbers<[2], [1], [1], [2], [0, 0, 0, 1, 1, 2], [0], [0]>} : vector<4x8x16xbf16>, vector<4x16x64xbf16>, vector<4x8x64xf32> -> vector<4x8x64xf32>
    "tpu.trace_stop"() : () -> ()
    %cst_26 = arith.constant dense<0.000000e+00> : vector<8x64xf32>
    %50 = vector.multi_reduction <add>, %49, %cst_26 [0] : vector<4x8x64xf32> to vector<8x64xf32>
    %51 = arith.addf %50, %3 : vector<8x64xf32>
    %cst_27 = arith.constant dense<0.000000e+00> : vector<8xf32>
    %52 = vector.multi_reduction <add>, %51, %cst_27 [1] : vector<8x64xf32> to vector<8xf32>
    %53 = vector.shape_cast %52 : vector<8xf32> to vector<8x1xf32>
    %cst_28 = arith.constant 6.400000e+01 : f32
    %54 = vector.broadcast %cst_28 : f32 to vector<8x1xf32>
    %55 = arith.divf %53, %54 : vector<8x1xf32>
    %56 = vector.broadcast %55 : vector<8x1xf32> to vector<8x64xf32>
    %57 = arith.subf %51, %56 : vector<8x64xf32>
    %58 = arith.mulf %57, %57 : vector<8x64xf32>
    %cst_29 = arith.constant dense<0.000000e+00> : vector<8xf32>
    %59 = vector.multi_reduction <add>, %58, %cst_29 [1] : vector<8x64xf32> to vector<8xf32>
    %60 = vector.shape_cast %59 : vector<8xf32> to vector<8x1xf32>
    %cst_30 = arith.constant 6.400000e+01 : f32
    %61 = vector.broadcast %cst_30 : f32 to vector<8x1xf32>
    %62 = arith.divf %60, %61 : vector<8x1xf32>
    %63 = vector.broadcast %55 : vector<8x1xf32> to vector<8x64xf32>
    %64 = arith.subf %51, %63 : vector<8x64xf32>
    %cst_31 = arith.constant 9.99999974E-6 : f32
    %65 = vector.broadcast %cst_31 : f32 to vector<8x1xf32>
    %66 = arith.addf %62, %65 : vector<8x1xf32>
    %67 = math.rsqrt %66 : vector<8x1xf32>
    %68 = vector.broadcast %67 : vector<8x1xf32> to vector<8x64xf32>
    %69 = arith.mulf %64, %68 : vector<8x64xf32>
    %c0_32 = arith.constant 0 : index
    %c0_33 = arith.constant 0 : index
    %c0_34 = arith.constant 0 : index
    %c0_35 = arith.constant 0 : index
    %c0_36 = arith.constant 0 : index
    %70 = vector.load %arg11[%c0_32, %c0_33, %c0_34, %c0_35, %c0_36] : memref<1x1x4x8x8xf32, #tpu.memory_space<vmem>>, vector<1x1x4x8x8xf32>
    %71 = vector.shape_cast %70 : vector<1x1x4x8x8xf32> to vector<4x8x8xf32>
    %72 = vector.shape_cast %44 : vector<4x8x8xf32> to vector<1x1x4x8x8xf32>
    tpu.vector_store %arg11[%c0_32, %c0_33, %c0_34, %c0_35, %c0_36], %72 {strides = array<i32>} : memref<1x1x4x8x8xf32, #tpu.memory_space<vmem>>, vector<1x1x4x8x8xf32>,
    %73 = arith.index_cast %arg1 : i32 to index
    %c0_37 = arith.constant 0 : index
    %c0_38 = arith.constant 0 : index
    %74 = vector.load %arg8[%73, %c0_37, %c0_38] : memref<6x64x512xbf16, #tpu.memory_space<vmem>>, vector<1x64x512xbf16>
    %75 = vector.shape_cast %74 : vector<1x64x512xbf16> to vector<64x512xbf16>
    %76 = arith.index_cast %arg1 : i32 to index
    %c0_39 = arith.constant 0 : index
    %c0_40 = arith.constant 0 : index
    %77 = vector.load %arg9[%76, %c0_39, %c0_40] : memref<6x512x64xbf16, #tpu.memory_space<vmem>>, vector<1x512x64xbf16>
    %78 = vector.shape_cast %77 : vector<1x512x64xbf16> to vector<512x64xbf16>
    %79 = arith.truncf %69 : vector<8x64xf32> to vector<8x64xbf16>
    %cst_41 = arith.constant dense<0.000000e+00> : vector<8x512xf32>
    %80 = tpu.matmul %79, %75, %cst_41 {dimension_numbers = #tpu.dot_dimension_numbers<[1], [0], [0], [1], [0, 0, 1, 1], [], []>} : vector<8x64xbf16>, vector<64x512xbf16>, vector<8x512xf32> -> vector<8x512xf32>
    %cst_42 = arith.constant 0.000000e+00 : f32
    %81 = vector.broadcast %cst_42 : f32 to vector<8x512xf32>
    %82 = arith.maximumf %80, %81 : vector<8x512xf32>
    %83 = arith.truncf %82 : vector<8x512xf32> to vector<8x512xbf16>
    %cst_43 = arith.constant dense<0.000000e+00> : vector<8x64xf32>
    %84 = tpu.matmul %83, %78, %cst_43 {dimension_numbers = #tpu.dot_dimension_numbers<[1], [0], [0], [1], [0, 0, 1, 1], [], []>} : vector<8x512xbf16>, vector<512x64xbf16>, vector<8x64xf32> -> vector<8x64xf32>
    %85 = arith.addf %84, %69 : vector<8x64xf32>
    %cst_44 = arith.constant dense<0.000000e+00> : vector<8xf32>
    %86 = vector.multi_reduction <add>, %85, %cst_44 [1] : vector<8x64xf32> to vector<8xf32>
    %87 = vector.shape_cast %86 : vector<8xf32> to vector<8x1xf32>
    %cst_45 = arith.constant 6.400000e+01 : f32
    %88 = vector.broadcast %cst_45 : f32 to vector<8x1xf32>
    %89 = arith.divf %87, %88 : vector<8x1xf32>
    %90 = vector.broadcast %89 : vector<8x1xf32> to vector<8x64xf32>
    %91 = arith.subf %85, %90 : vector<8x64xf32>
    %92 = arith.mulf %91, %91 : vector<8x64xf32>
    %cst_46 = arith.constant dense<0.000000e+00> : vector<8xf32>
    %93 = vector.multi_reduction <add>, %92, %cst_46 [1] : vector<8x64xf32> to vector<8xf32>
    %94 = vector.shape_cast %93 : vector<8xf32> to vector<8x1xf32>
    %cst_47 = arith.constant 6.400000e+01 : f32
    %95 = vector.broadcast %cst_47 : f32 to vector<8x1xf32>
    %96 = arith.divf %94, %95 : vector<8x1xf32>
    %97 = vector.broadcast %89 : vector<8x1xf32> to vector<8x64xf32>
    %98 = arith.subf %85, %97 : vector<8x64xf32>
    %cst_48 = arith.constant 9.99999974E-6 : f32
    %99 = vector.broadcast %cst_48 : f32 to vector<8x1xf32>
    %100 = arith.addf %96, %99 : vector<8x1xf32>
    %101 = math.rsqrt %100 : vector<8x1xf32>
    %102 = vector.broadcast %101 : vector<8x1xf32> to vector<8x64xf32>
    %103 = arith.mulf %98, %102 : vector<8x64xf32>
    %c0_49 = arith.constant 0 : index
    %c0_50 = arith.constant 0 : index
    %104 = vector.load %arg12[%c0_49, %c0_50] : memref<8x64xf32, #tpu.memory_space<vmem>>, vector<8x64xf32>
    tpu.vector_store %arg12[%c0_49, %c0_50], %103 {strides = array<i32>} : memref<8x64xf32, #tpu.memory_space<vmem>>, vector<8x64xf32>,
    %c0_51 = arith.constant 0 : index
    %c0_52 = arith.constant 0 : index
    %c0_53 = arith.constant 0 : index
    %105 = vector.load %arg10[%c0_51, %c0_52, %c0_53] : memref<1x8x64xf32, #tpu.memory_space<vmem>>, vector<1x8x64xf32>
    %106 = vector.shape_cast %105 : vector<1x8x64xf32> to vector<8x64xf32>
    %107 = vector.shape_cast %103 : vector<8x64xf32> to vector<1x8x64xf32>
    tpu.vector_store %arg10[%c0_51, %c0_52, %c0_53], %107 {strides = array<i32>} : memref<1x8x64xf32, #tpu.memory_space<vmem>>, vector<1x8x64xf32>,
    return
  }
  func.func @transform_0(%arg0: i32, %arg1: i32) -> (i32, i32, i32) {
    %c0_i32 = arith.constant 0 : i32
    %c0_i32_0 = arith.constant 0 : i32
    %c0_i32_1 = arith.constant 0 : i32
    return %arg0, %c0_i32, %c0_i32_0 : i32, i32, i32
  }
  func.func @transform_1(%arg0: i32, %arg1: i32) -> (i32, i32, i32, i32) {
    %c0_i32 = arith.constant 0 : i32
    %c0_i32_0 = arith.constant 0 : i32
    %c0_i32_1 = arith.constant 0 : i32
    %c0_i32_2 = arith.constant 0 : i32
    return %arg0, %c0_i32, %c0_i32_0, %c0_i32_1 : i32, i32, i32, i32
  }
  func.func @transform_2(%arg0: i32, %arg1: i32) -> (i32, i32, i32, i32) {
    %c0_i32 = arith.constant 0 : i32
    %c0_i32_0 = arith.constant 0 : i32
    %c0_i32_1 = arith.constant 0 : i32
    %c0_i32_2 = arith.constant 0 : i32
    %c0_i32_3 = arith.constant 0 : i32
    return %c0_i32, %c0_i32_0, %c0_i32_1, %c0_i32_2 : i32, i32, i32, i32
  }
  func.func @transform_3(%arg0: i32, %arg1: i32) -> (i32, i32, i32, i32) {
    %c0_i32 = arith.constant 0 : i32
    %c0_i32_0 = arith.constant 0 : i32
    %c0_i32_1 = arith.constant 0 : i32
    %c0_i32_2 = arith.constant 0 : i32
    %c0_i32_3 = arith.constant 0 : i32
    return %c0_i32, %c0_i32_0, %c0_i32_1, %c0_i32_2 : i32, i32, i32, i32
  }
  func.func @transform_4(%arg0: i32, %arg1: i32) -> (i32, i32, i32, i32) {
    %c0_i32 = arith.constant 0 : i32
    %c0_i32_0 = arith.constant 0 : i32
    %c0_i32_1 = arith.constant 0 : i32
    %c0_i32_2 = arith.constant 0 : i32
    %c0_i32_3 = arith.constant 0 : i32
    return %c0_i32, %c0_i32_0, %c0_i32_1, %c0_i32_2 : i32, i32, i32, i32
  }
  func.func @transform_5(%arg0: i32, %arg1: i32) -> (i32, i32, i32, i32) {
    %c0_i32 = arith.constant 0 : i32
    %c0_i32_0 = arith.constant 0 : i32
    %c0_i32_1 = arith.constant 0 : i32
    %c0_i32_2 = arith.constant 0 : i32
    %c0_i32_3 = arith.constant 0 : i32
    return %c0_i32, %c0_i32_0, %c0_i32_1, %c0_i32_2 : i32, i32, i32, i32
  }
  func.func @transform_6(%arg0: i32, %arg1: i32) -> (i32, i32, i32) {
    %c0_i32 = arith.constant 0 : i32
    %c0_i32_0 = arith.constant 0 : i32
    %c0_i32_1 = arith.constant 0 : i32
    %c0_i32_2 = arith.constant 0 : i32
    return %c0_i32, %c0_i32_0, %c0_i32_1 : i32, i32, i32
  }
  func.func @transform_7(%arg0: i32, %arg1: i32) -> (i32, i32, i32) {
    %c0_i32 = arith.constant 0 : i32
    %c0_i32_0 = arith.constant 0 : i32
    %c0_i32_1 = arith.constant 0 : i32
    %c0_i32_2 = arith.constant 0 : i32
    return %c0_i32, %c0_i32_0, %c0_i32_1 : i32, i32, i32
  }
  func.func @transform_8(%arg0: i32, %arg1: i32) -> (i32, i32, i32) {
    %c0_i32 = arith.constant 0 : i32
    %c0_i32_0 = arith.constant 0 : i32
    %c0_i32_1 = arith.constant 0 : i32
    return %arg0, %c0_i32, %c0_i32_0 : i32, i32, i32
  }
  func.func @transform_9(%arg0: i32, %arg1: i32) -> (i32, i32, i32, i32, i32) {
    %c0_i32 = arith.constant 0 : i32
    %c0_i32_0 = arith.constant 0 : i32
    %c0_i32_1 = arith.constant 0 : i32
    %c0_i32_2 = arith.constant 0 : i32
    return %arg1, %arg0, %c0_i32, %c0_i32_0, %c0_i32_1 : i32, i32, i32, i32, i32
  }
}

</mosaic_0001>

<llo_original>
// kernel: tpu_custom_call.1
$region0: #{tpu_custom_call.1}
  #allocation0 [shape = 'u32[]', space=smem, size = 0x4, offset = 0x4, fixed_abs, tag = 'smem constant byte address 0x4 - core index']
  #allocation1 [shape = 'u32[144,128]{1,0:T(1,128)}', space=vmem, size = 0x12000, scoped, tag = 'internal scratch']
  #allocation2 [shape = 'f32[8,64]{1,0:T(8,128)}', space=vmem, size = 0x1000, scoped, tag = 'scratch operand']
  %s0 = inlined_call_operand.vmem [shape: f32[2,8,64], index: 0, kind: input, shape index: {}]
  %s1 = inlined_call_operand.vmem [shape: f32[2,4,8,8], index: 1, kind: input, shape index: {}]
  %s2 = inlined_call_operand.vmem [shape: bf16[6,4,64,16], index: 2, kind: input, shape index: {}]
  %s3 = inlined_call_operand.vmem [shape: bf16[6,4,64,16], index: 3, kind: input, shape index: {}]
  %s4 = inlined_call_operand.vmem [shape: bf16[6,4,64,16], index: 4, kind: input, shape index: {}]
  %s5 = inlined_call_operand.vmem [shape: bf16[6,4,16,64], index: 5, kind: input, shape index: {}]
  %s6 = inlined_call_operand.vmem [shape: bf16[6,64,512], index: 6, kind: input, shape index: {}]
  %s7 = inlined_call_operand.vmem [shape: bf16[6,512,64], index: 7, kind: input, shape index: {}]
  %s8 = inlined_call_operand.hbm [shape: f32[2,8,64], index: 8, kind: output, shape index: {0}]
  %s9 = inlined_call_operand.hbm [shape: f32[6,2,4,8,8], index: 9, kind: output, shape index: {1}]
  %10 = xla_tuple %s8, %s9
  %s11 = sld [smem:[#allocation0]]
  $region77: #{tpu_custom_call.1} parent=0
    _
  %s13 = ssub.s32 1, %s11
  %s14 = scalar_select 0, %s13, %s11
  $region1: #{tpu_custom_call.1} parent=0
    #allocation3 [shape = 'u8[8192]{0}', space=vmem, size = 0x2000, scoped, tag = 'output window, operand 0']
    #allocation4 [shape = 's32[2]{0}', space=sflag, size = 0x8, scoped, tag = 'scoped memory for tpu_custom_call.1']
    #allocation5 [shape = 'u8[32768]{0}', space=vmem, size = 0x8000, scoped, tag = 'output window, operand 1']
    #allocation6 [shape = 's32[2]{0}', space=sflag, size = 0x8, scoped, tag = 'scoped memory for tpu_custom_call.1']
    %15 = vsyncpa [#allocation4], 0
    %s16 = scalar_lea.sflag [#allocation4], 1
    %17 = vsyncpa %s16, 0
    %18 = vsyncpa [#allocation6], 0
    %s19 = scalar_lea.sflag [#allocation6], 1
    %20 = vsyncpa %s19, 0
    loop: start=0, step=1, limit=14
    $region2: #{tpu_custom_call.1} parent=1 // loop_pre_header
      _
    $region3: #{tpu_custom_call.1} parent=1 // loop_header
      %s22 = sphi 0, %s26
      %p23 = scmp.ge.s32.totalorder %s22, 14
      %s29 = sphi 0, %s41
      %s30 = sphi 0, %s37
      %s31 = sphi 0, %s29
      %s32 = sphi 0, %s30
      %s33 = sphi 0, %s31
      %s34 = sphi 0, %s32
      %s44 = sphi 0, %s46
      %s47 = sphi 0, %s44
      %s48 = sphi 0, %s47
      %s64 = sphi 0, %s48
      %s70 = sphi 0, %s72
      %s73 = sphi 0, %s70
      %s74 = sphi 0, %s73
      %s90 = sphi 0, %s74
      %s94 = sphi 0, %s94
      %s96 = sphi 0, %s94
      %s97 = sphi 0, %s96
      %s111 = sphi 0, %s97
      %s115 = sphi 0, %s115
      %s117 = sphi 0, %s115
      %s118 = sphi 0, %s117
      %s132 = sphi 0, %s118
      %s136 = sphi 0, %s136
      %s138 = sphi 0, %s136
      %s139 = sphi 0, %s138
      %s153 = sphi 0, %s139
      %s157 = sphi 0, %s157
      %s159 = sphi 0, %s157
      %s160 = sphi 0, %s159
      %s174 = sphi 0, %s160
      %s178 = sphi 0, %s178
      %s180 = sphi 0, %s178
      %s181 = sphi 0, %s180
      %s195 = sphi 0, %s181
      %s199 = sphi 0, %s199
      %s201 = sphi 0, %s199
      %s202 = sphi 0, %s201
      %s216 = sphi 0, %s202
      %s222 = sphi 0, %s224
      %s225 = sphi 0, %s222
      %s226 = sphi 0, %s225
      %s242 = sphi 0, %s226
      %s250 = sphi 0, %s252
      %s253 = sphi 0, %s250
      %s254 = sphi 0, %s253
      %s270 = sphi 0, %s254
    $region4: #{tpu_custom_call.1} parent=1 // loop_header_branch
      %25 = sbr.rel (%p23) target = $region8
    $region5: #{tpu_custom_call.1} parent=1 // loop_body
      %s27 = ssub.s32 %s22, 1
      %s28 = ssub.s32 %s22, 2
      %s35 = sadd.s32 1, %s30
      %p36 = scmp.ge.s32.totalorder %s35, 6
      %s37 = scalar_select %p36, 0, %s35
      %s38 = sadd.s32 1, %s29
      %s39 = scalar_select %p36, %s38, %s29
      %p40 = scmp.ge.s32.totalorder %s39, 2
      %s41 = scalar_select %p40, 0, %s39
      %s42 = ssub.s32 %s29, %s41
      %p43 = scmp.eq.s32.totalorder %s42, 0
      %s45 = sadd.s32 %s44, 1
      %s46 = scalar_select %p43, %s44, %s45
      %p49 = pneg %p43
      %p50 = scmp.eq.s32.totalorder %s22, 11
      %p51 = por %p49, %p50
      %p52 = scmp.ne.s32.totalorder %s44, %s47
      %p53 = scmp.eq.s32.totalorder %s22, 0
      %p54 = por %p52, %p53
      %p55 = scmp.ne.s32.totalorder %s44, %s47
      %p56 = scmp.eq.s32.totalorder %s27, 11
      %p57 = por %p55, %p56
      %p58 = scmp.ne.s32.totalorder %s47, %s48
      %p59 = scmp.eq.s32.totalorder %s27, 0
      %p60 = por %p58, %p59
      %p61 = scmp.ne.s32.totalorder %s47, %s48
      %p62 = scmp.eq.s32.totalorder %s28, 11
      %p63 = por %p61, %p62
      %p65 = scmp.ne.s32.totalorder %s48, %s64
      %p66 = scmp.eq.s32.totalorder %s28, 0
      %p67 = por %p65, %p66
      %s68 = ssub.s32 %s29, %s41
      %p69 = scmp.eq.s32.totalorder %s68, 0
      %s71 = sadd.s32 %s70, 1
      %s72 = scalar_select %p69, %s70, %s71
      %p75 = pneg %p69
      %p76 = scmp.eq.s32.totalorder %s22, 11
      %p77 = por %p75, %p76
      %p78 = scmp.ne.s32.totalorder %s70, %s73
      %p79 = scmp.eq.s32.totalorder %s22, 0
      %p80 = por %p78, %p79
      %p81 = scmp.ne.s32.totalorder %s70, %s73
      %p82 = scmp.eq.s32.totalorder %s27, 11
      %p83 = por %p81, %p82
      %p84 = scmp.ne.s32.totalorder %s73, %s74
      %p85 = scmp.eq.s32.totalorder %s27, 0
      %p86 = por %p84, %p85
      %p87 = scmp.ne.s32.totalorder %s73, %s74
      %p88 = scmp.eq.s32.totalorder %s28, 11
      %p89 = por %p87, %p88
      %p91 = scmp.ne.s32.totalorder %s74, %s90
      %p92 = scmp.eq.s32.totalorder %s28, 0
      %p93 = por %p91, %p92
      %s95 = sadd.s32 %s94, 1
      %p98 = scmp.eq.s32.totalorder %s22, 11
      %p99 = scmp.ne.s32.totalorder %s94, %s96
      %p100 = scmp.eq.s32.totalorder %s22, 0
      %p101 = por %p99, %p100
      %p102 = scmp.ne.s32.totalorder %s94, %s96
      %p103 = scmp.eq.s32.totalorder %s27, 11
      %p104 = por %p102, %p103
      %p105 = scmp.ne.s32.totalorder %s96, %s97
      %p106 = scmp.eq.s32.totalorder %s27, 0
      %p107 = por %p105, %p106
      %p108 = scmp.ne.s32.totalorder %s96, %s97
      %p109 = scmp.eq.s32.totalorder %s28, 11
      %p110 = por %p108, %p109
      %p112 = scmp.ne.s32.totalorder %s97, %s111
      %p113 = scmp.eq.s32.totalorder %s28, 0
      %p114 = por %p112, %p113
      %s116 = sadd.s32 %s115, 1
      %p119 = scmp.eq.s32.totalorder %s22, 11
      %p120 = scmp.ne.s32.totalorder %s115, %s117
      %p121 = scmp.eq.s32.totalorder %s22, 0
      %p122 = por %p120, %p121
      %p123 = scmp.ne.s32.totalorder %s115, %s117
      %p124 = scmp.eq.s32.totalorder %s27, 11
      %p125 = por %p123, %p124
      %p126 = scmp.ne.s32.totalorder %s117, %s118
      %p127 = scmp.eq.s32.totalorder %s27, 0
      %p128 = por %p126, %p127
      %p129 = scmp.ne.s32.totalorder %s117, %s118
      %p130 = scmp.eq.s32.totalorder %s28, 11
      %p131 = por %p129, %p130
      %p133 = scmp.ne.s32.totalorder %s118, %s132
      %p134 = scmp.eq.s32.totalorder %s28, 0
      %p135 = por %p133, %p134
      %s137 = sadd.s32 %s136, 1
      %p140 = scmp.eq.s32.totalorder %s22, 11
      %p141 = scmp.ne.s32.totalorder %s136, %s138
      %p142 = scmp.eq.s32.totalorder %s22, 0
      %p143 = por %p141, %p142
      %p144 = scmp.ne.s32.totalorder %s136, %s138
      %p145 = scmp.eq.s32.totalorder %s27, 11
      %p146 = por %p144, %p145
      %p147 = scmp.ne.s32.totalorder %s138, %s139
      %p148 = scmp.eq.s32.totalorder %s27, 0
      %p149 = por %p147, %p148
      %p150 = scmp.ne.s32.totalorder %s138, %s139
      %p151 = scmp.eq.s32.totalorder %s28, 11
      %p152 = por %p150, %p151
      %p154 = scmp.ne.s32.totalorder %s139, %s153
      %p155 = scmp.eq.s32.totalorder %s28, 0
      %p156 = por %p154, %p155
      %s158 = sadd.s32 %s157, 1
      %p161 = scmp.eq.s32.totalorder %s22, 11
      %p162 = scmp.ne.s32.totalorder %s157, %s159
      %p163 = scmp.eq.s32.totalorder %s22, 0
      %p164 = por %p162, %p163
      %p165 = scmp.ne.s32.totalorder %s157, %s159
      %p166 = scmp.eq.s32.totalorder %s27, 11
      %p167 = por %p165, %p166
      %p168 = scmp.ne.s32.totalorder %s159, %s160
      %p169 = scmp.eq.s32.totalorder %s27, 0
      %p170 = por %p168, %p169
      %p171 = scmp.ne.s32.totalorder %s159, %s160
      %p172 = scmp.eq.s32.totalorder %s28, 11
      %p173 = por %p171, %p172
      %p175 = scmp.ne.s32.totalorder %s160, %s174
      %p176 = scmp.eq.s32.totalorder %s28, 0
      %p177 = por %p175, %p176
      %s179 = sadd.s32 %s178, 1
      %p182 = scmp.eq.s32.totalorder %s22, 11
      %p183 = scmp.ne.s32.totalorder %s178, %s180
      %p184 = scmp.eq.s32.totalorder %s22, 0
      %p185 = por %p183, %p184
      %p186 = scmp.ne.s32.totalorder %s178, %s180
      %p187 = scmp.eq.s32.totalorder %s27, 11
      %p188 = por %p186, %p187
      %p189 = scmp.ne.s32.totalorder %s180, %s181
      %p190 = scmp.eq.s32.totalorder %s27, 0
      %p191 = por %p189, %p190
      %p192 = scmp.ne.s32.totalorder %s180, %s181
      %p193 = scmp.eq.s32.totalorder %s28, 11
      %p194 = por %p192, %p193
      %p196 = scmp.ne.s32.totalorder %s181, %s195
      %p197 = scmp.eq.s32.totalorder %s28, 0
      %p198 = por %p196, %p197
      %s200 = sadd.s32 %s199, 1
      %p203 = scmp.eq.s32.totalorder %s22, 11
      %p204 = scmp.ne.s32.totalorder %s199, %s201
      %p205 = scmp.eq.s32.totalorder %s22, 0
      %p206 = por %p204, %p205
      %p207 = scmp.ne.s32.totalorder %s199, %s201
      %p208 = scmp.eq.s32.totalorder %s27, 11
      %p209 = por %p207, %p208
      %p210 = scmp.ne.s32.totalorder %s201, %s202
      %p211 = scmp.eq.s32.totalorder %s27, 0
      %p212 = por %p210, %p211
      %p213 = scmp.ne.s32.totalorder %s201, %s202
      %p214 = scmp.eq.s32.totalorder %s28, 11
      %p215 = por %p213, %p214
      %p217 = scmp.ne.s32.totalorder %s202, %s216
      %p218 = scmp.eq.s32.totalorder %s28, 0
      %p219 = por %p217, %p218
      %s220 = ssub.s32 %s29, %s41
      %p221 = scmp.eq.s32.totalorder %s220, 0
      %s223 = sadd.s32 %s222, 1
      %s224 = scalar_select %p221, %s222, %s223
      %p227 = pneg %p221
      %p228 = scmp.eq.s32.totalorder %s22, 11
      %p229 = por %p227, %p228
      %p230 = scmp.ne.s32.totalorder %s222, %s225
      %p231 = scmp.eq.s32.totalorder %s22, 0
      %p232 = por %p230, %p231
      %p233 = scmp.ne.s32.totalorder %s222, %s225
      %p234 = scmp.eq.s32.totalorder %s27, 11
      %p235 = por %p233, %p234
      %p236 = scmp.ne.s32.totalorder %s225, %s226
      %p237 = scmp.eq.s32.totalorder %s27, 0
      %p238 = por %p236, %p237
      %p239 = scmp.ne.s32.totalorder %s225, %s226
      %p240 = scmp.eq.s32.totalorder %s28, 11
      %p241 = por %p239, %p240
      %p243 = scmp.ne.s32.totalorder %s226, %s242
      %p244 = scmp.eq.s32.totalorder %s28, 0
      %p245 = por %p243, %p244
      %s246 = ssub.s32 %s30, %s37
      %s247 = ssub.s32 %s29, %s41
      %s248 = sor.u32 %s246, %s247
      %p249 = scmp.eq.s32.totalorder %s248, 0
      %s251 = sadd.s32 %s250, 1
      %s252 = scalar_select %p249, %s250, %s251
      %p255 = pneg %p249
      %p256 = scmp.eq.s32.totalorder %s22, 11
      %p257 = por %p255, %p256
      %p258 = scmp.ne.s32.totalorder %s250, %s253
      %p259 = scmp.eq.s32.totalorder %s22, 0
      %p260 = por %p258, %p259
      %p261 = scmp.ne.s32.totalorder %s250, %s253
      %p262 = scmp.eq.s32.totalorder %s27, 11
      %p263 = por %p261, %p262
      %p264 = scmp.ne.s32.totalorder %s253, %s254
      %p265 = scmp.eq.s32.totalorder %s27, 0
      %p266 = por %p264, %p265
      %p267 = scmp.ne.s32.totalorder %s253, %s254
      %p268 = scmp.eq.s32.totalorder %s28, 11
      %p269 = por %p267, %p268
      %p271 = scmp.ne.s32.totalorder %s254, %s270
      %p272 = scmp.eq.s32.totalorder %s28, 0
      %p273 = por %p271, %p272
      %p274 = scmp.le.s32.totalorder 1, %s22
      %p275 = scmp.lt.s32.totalorder %s22, 13
      %p276 = pnand %p274, %p275
      %p277 = pneg %p276
      // Predicated region
      $region9: #{tpu_custom_call.1} parent=5 // pred_check
        _
      $region10: #{tpu_custom_call.1} parent=5 // pred_check_branch
        %279 = sbr.rel (%p276) target = $region12
      $region11: #{tpu_custom_call.1} parent=5 // pred_region
        %s280 = ssub.s32 %s22, 1
        // Predicated region
        $region13: #{tpu_custom_call.1} parent=11 // pred_check
          %p281 = pneg %p107
        $region14: #{tpu_custom_call.1} parent=11 // pred_check_branch
          %283 = sbr.rel (%p281) target = $region16
        $region15: #{tpu_custom_call.1} parent=11 // pred_region
          _
        $region16: #{tpu_custom_call.1} parent=11 // pred_fallthru
          _
        // Predicated region
        $region17: #{tpu_custom_call.1} parent=11 // pred_check
          %p284 = pneg %p128
        $region18: #{tpu_custom_call.1} parent=11 // pred_check_branch
          %286 = sbr.rel (%p284) target = $region20
        $region19: #{tpu_custom_call.1} parent=11 // pred_region
          _
        $region20: #{tpu_custom_call.1} parent=11 // pred_fallthru
          _
        // Predicated region
        $region21: #{tpu_custom_call.1} parent=11 // pred_check
          %p287 = pneg %p149
        $region22: #{tpu_custom_call.1} parent=11 // pred_check_branch
          %289 = sbr.rel (%p287) target = $region24
        $region23: #{tpu_custom_call.1} parent=11 // pred_region
          _
        $region24: #{tpu_custom_call.1} parent=11 // pred_fallthru
          _
        // Predicated region
        $region25: #{tpu_custom_call.1} parent=11 // pred_check
          %p290 = pneg %p170
        $region26: #{tpu_custom_call.1} parent=11 // pred_check_branch
          %292 = sbr.rel (%p290) target = $region28
        $region27: #{tpu_custom_call.1} parent=11 // pred_region
          _
        $region28: #{tpu_custom_call.1} parent=11 // pred_fallthru
          _
        // Predicated region
        $region29: #{tpu_custom_call.1} parent=11 // pred_check
          %p293 = pneg %p191
        $region30: #{tpu_custom_call.1} parent=11 // pred_check_branch
          %295 = sbr.rel (%p293) target = $region32
        $region31: #{tpu_custom_call.1} parent=11 // pred_region
          _
        $region32: #{tpu_custom_call.1} parent=11 // pred_fallthru
          _
        // Predicated region
        $region33: #{tpu_custom_call.1} parent=11 // pred_check
          %p296 = pneg %p212
        $region34: #{tpu_custom_call.1} parent=11 // pred_check_branch
          %298 = sbr.rel (%p296) target = $region36
        $region35: #{tpu_custom_call.1} parent=11 // pred_region
          _
        $region36: #{tpu_custom_call.1} parent=11 // pred_fallthru
          _
      $region12: #{tpu_custom_call.1} parent=5 // pred_fallthru
        _
      %p299 = scmp.lt.s32.totalorder %s22, 12
      // Predicated region
      $region37: #{tpu_custom_call.1} parent=5 // pred_check
        %p300 = pneg %p299
      $region38: #{tpu_custom_call.1} parent=5 // pred_check_branch
        %302 = sbr.rel (%p300) target = $region40
      $region39: #{tpu_custom_call.1} parent=5 // pred_region
        // Predicated region
        $region41: #{tpu_custom_call.1} parent=39 // pred_check
          %p303 = pneg %p54
        $region42: #{tpu_custom_call.1} parent=39 // pred_check_branch
          %305 = sbr.rel (%p303) target = $region44
        $region43: #{tpu_custom_call.1} parent=39 // pred_region
          %p306 = scmp.lt.s32.totalorder %s29, 1
          %s307 = scalar_select %p306, %s29, 1
          %s308 = smul.addr %s307, 8
          %s309 = scalar_lea.vmem %s0, %s308
        $region44: #{tpu_custom_call.1} parent=39 // pred_fallthru
          _
        // Predicated region
        $region45: #{tpu_custom_call.1} parent=39 // pred_check
          %p310 = pneg %p80
        $region46: #{tpu_custom_call.1} parent=39 // pred_check_branch
          %312 = sbr.rel (%p310) target = $region48
        $region47: #{tpu_custom_call.1} parent=39 // pred_region
          %p313 = scmp.lt.s32.totalorder %s29, 1
          %s314 = scalar_select %p313, %s29, 1
          %s315 = smul.addr %s314, 4
          %s316 = smul.addr %s315, 8
          %s317 = scalar_lea.vmem %s1, %s316
        $region48: #{tpu_custom_call.1} parent=39 // pred_fallthru
          _
      $region40: #{tpu_custom_call.1} parent=5 // pred_fallthru
        _
      %p318 = scmp.le.s32.totalorder 1, %s22
      %p319 = scmp.lt.s32.totalorder %s22, 13
      %p320 = pnand %p318, %p319
      %p321 = pneg %p320
      // Predicated region
      $region49: #{tpu_custom_call.1} parent=5 // pred_check
        _
      $region50: #{tpu_custom_call.1} parent=5 // pred_check_branch
        %323 = sbr.rel (%p320) target = $region52
      $region51: #{tpu_custom_call.1} parent=5 // pred_region
        %s324 = ssub.s32 %s22, 1
        %p325 = scmp.lt.s32.totalorder %s31, 1
        %s326 = scalar_select %p325, %s31, 1
        %s327 = smul.addr %s326, 8
        %s328 = scalar_lea.vmem %s0, %s327
        %p329 = pneg %p60
        %p330 = pneg %p57
        %p331 = scmp.lt.s32.totalorder %s31, 1
        %s332 = scalar_select %p331, %s31, 1
        %s333 = smul.addr %s332, 4
        %s334 = smul.addr %s333, 8
        %s335 = scalar_lea.vmem %s1, %s334
        %p336 = pneg %p86
        %p337 = pneg %p83
        %p338 = pneg %p107
        %p339 = pneg %p104
        %p340 = pneg %p128
        %p341 = pneg %p125
        %p342 = pneg %p149
        %p343 = pneg %p146
        %p344 = pneg %p170
        %p345 = pneg %p167
        %p346 = pneg %p191
        %p347 = pneg %p188
        %p348 = pneg %p212
        %p349 = pneg %p209
        %p350 = pneg %p238
        %p351 = pneg %p235
        %s352 = sand.u32 %s225, 1
        %s353 = scalar_lea.sflag [#allocation4], %s352
        %s354 = sand.u32 %s225, 1
        %s355 = smul.addr %s354, 8
        %s356 = scalar_lea.vmem [#allocation3], %s355
        %p357 = pneg %p266
        %p358 = pneg %p263
        %s359 = sand.u32 %s253, 1
        %s360 = scalar_lea.sflag [#allocation6], %s359
        %s361 = sand.u32 %s253, 1
        %s362 = smul.addr %s361, 32
        %s363 = scalar_lea.vmem [#allocation5], %s362
        %p364 = scmp.lt.s32.totalorder %s31, 1
        %s365 = scalar_select %p364, %s31, 1
        %s366 = smul.addr %s365, 8
        %s367 = scalar_lea.vmem %s0, %s366
        %p368 = scmp.lt.s32.totalorder %s31, 1
        %s369 = scalar_select %p368, %s31, 1
        %s370 = smul.addr %s369, 4
        %s371 = smul.addr %s370, 8
        %s372 = scalar_lea.vmem %s1, %s371
        %p374 = scmp.eq.s32.totalorder %s32, 0
        // Predicated region
        $region53: #{tpu_custom_call.1} parent=51 // pred_check
          %p375 = pneg %p374
        $region54: #{tpu_custom_call.1} parent=51 // pred_check_branch
          %377 = sbr.rel (%p375) target = $region56
        $region55: #{tpu_custom_call.1} parent=51 // pred_region
          %v378 = vld [vmem:[%s367] sm:$0xff]
          %vm379 = vcmask 523264
          %380 = vst.msk [vmem:[#allocation2] sm:$0xff] %vm379, %v378
        $region56: #{tpu_custom_call.1} parent=51 // pred_fallthru
          _
        %v381 = vld [vmem:[#allocation2] sm:$0xff]
        %s382 = smul.u32 %s32, 32
        %s383 = smul.addr %s382, 4
        %s384 = scalar_lea.vmem %s2, %s383
        %v385 = vld [vmem:[%s384] sm:$0xf]
        %v386 = vld [vmem:[%s384 + $0x4] sm:$0xf]
        %v387 = vld [vmem:[%s384 + $0x8] sm:$0xf]
        %v388 = vld [vmem:[%s384 + $0xc] sm:$0xf]
        %v389 = vld [vmem:[%s384 + $0x10] sm:$0xf]
        %v390 = vld [vmem:[%s384 + $0x14] sm:$0xf]
        %v391 = vld [vmem:[%s384 + $0x18] sm:$0xf]
        %v392 = vld [vmem:[%s384 + $0x1c] sm:$0xf]
        %v393 = vld [vmem:[%s384 + $0x20] sm:$0xf]
        %v394 = vld [vmem:[%s384 + $0x24] sm:$0xf]
        %v395 = vld [vmem:[%s384 + $0x28] sm:$0xf]
        %v396 = vld [vmem:[%s384 + $0x2c] sm:$0xf]
        %v397 = vld [vmem:[%s384 + $0x30] sm:$0xf]
        %v398 = vld [vmem:[%s384 + $0x34] sm:$0xf]
        %v399 = vld [vmem:[%s384 + $0x38] sm:$0xf]
        %v400 = vld [vmem:[%s384 + $0x3c] sm:$0xf]
        %v401 = vld [vmem:[%s384 + $0x40] sm:$0xf]
        %v402 = vld [vmem:[%s384 + $0x44] sm:$0xf]
        %v403 = vld [vmem:[%s384 + $0x48] sm:$0xf]
        %v404 = vld [vmem:[%s384 + $0x4c] sm:$0xf]
        %v405 = vld [vmem:[%s384 + $0x50] sm:$0xf]
        %v406 = vld [vmem:[%s384 + $0x54] sm:$0xf]
        %v407 = vld [vmem:[%s384 + $0x58] sm:$0xf]
        %v408 = vld [vmem:[%s384 + $0x5c] sm:$0xf]
        %v409 = vld [vmem:[%s384 + $0x60] sm:$0xf]
        %v410 = vld [vmem:[%s384 + $0x64] sm:$0xf]
        %v411 = vld [vmem:[%s384 + $0x68] sm:$0xf]
        %v412 = vld [vmem:[%s384 + $0x6c] sm:$0xf]
        %v413 = vld [vmem:[%s384 + $0x70] sm:$0xf]
        %v414 = vld [vmem:[%s384 + $0x74] sm:$0xf]
        %v415 = vld [vmem:[%s384 + $0x78] sm:$0xf]
        %v416 = vld [vmem:[%s384 + $0x7c] sm:$0xf]
        %s417 = smul.addr %s382, 4
        %s418 = scalar_lea.vmem %s3, %s417
        %v419 = vld [vmem:[%s418] sm:$0xf]
        %v420 = vld [vmem:[%s418 + $0x4] sm:$0xf]
        %v421 = vld [vmem:[%s418 + $0x8] sm:$0xf]
        %v422 = vld [vmem:[%s418 + $0xc] sm:$0xf]
        %v423 = vld [vmem:[%s418 + $0x10] sm:$0xf]
        %v424 = vld [vmem:[%s418 + $0x14] sm:$0xf]
        %v425 = vld [vmem:[%s418 + $0x18] sm:$0xf]
        %v426 = vld [vmem:[%s418 + $0x1c] sm:$0xf]
        %v427 = vld [vmem:[%s418 + $0x20] sm:$0xf]
        %v428 = vld [vmem:[%s418 + $0x24] sm:$0xf]
        %v429 = vld [vmem:[%s418 + $0x28] sm:$0xf]
        %v430 = vld [vmem:[%s418 + $0x2c] sm:$0xf]
        %v431 = vld [vmem:[%s418 + $0x30] sm:$0xf]
        %v432 = vld [vmem:[%s418 + $0x34] sm:$0xf]
        %v433 = vld [vmem:[%s418 + $0x38] sm:$0xf]
        %v434 = vld [vmem:[%s418 + $0x3c] sm:$0xf]
        %v435 = vld [vmem:[%s418 + $0x40] sm:$0xf]
        %v436 = vld [vmem:[%s418 + $0x44] sm:$0xf]
        %v437 = vld [vmem:[%s418 + $0x48] sm:$0xf]
        %v438 = vld [vmem:[%s418 + $0x4c] sm:$0xf]
        %v439 = vld [vmem:[%s418 + $0x50] sm:$0xf]
        %v440 = vld [vmem:[%s418 + $0x54] sm:$0xf]
        %v441 = vld [vmem:[%s418 + $0x58] sm:$0xf]
        %v442 = vld [vmem:[%s418 + $0x5c] sm:$0xf]
        %v443 = vld [vmem:[%s418 + $0x60] sm:$0xf]
        %v444 = vld [vmem:[%s418 + $0x64] sm:$0xf]
        %v445 = vld [vmem:[%s418 + $0x68] sm:$0xf]
        %v446 = vld [vmem:[%s418 + $0x6c] sm:$0xf]
        %v447 = vld [vmem:[%s418 + $0x70] sm:$0xf]
        %v448 = vld [vmem:[%s418 + $0x74] sm:$0xf]
        %v449 = vld [vmem:[%s418 + $0x78] sm:$0xf]
        %v450 = vld [vmem:[%s418 + $0x7c] sm:$0xf]
        %s451 = smul.addr %s382, 4
        %s452 = scalar_lea.vmem %s4, %s451
        %v453 = vld [vmem:[%s452] sm:$0xf]
        %v454 = vld [vmem:[%s452 + $0x4] sm:$0xf]
        %v455 = vld [vmem:[%s452 + $0x8] sm:$0xf]
        %v456 = vld [vmem:[%s452 + $0xc] sm:$0xf]
        %v457 = vld [vmem:[%s452 + $0x10] sm:$0xf]
        %v458 = vld [vmem:[%s452 + $0x14] sm:$0xf]
        %v459 = vld [vmem:[%s452 + $0x18] sm:$0xf]
        %v460 = vld [vmem:[%s452 + $0x1c] sm:$0xf]
        %v461 = vld [vmem:[%s452 + $0x20] sm:$0xf]
        %v462 = vld [vmem:[%s452 + $0x24] sm:$0xf]
        %v463 = vld [vmem:[%s452 + $0x28] sm:$0xf]
        %v464 = vld [vmem:[%s452 + $0x2c] sm:$0xf]
        %v465 = vld [vmem:[%s452 + $0x30] sm:$0xf]
        %v466 = vld [vmem:[%s452 + $0x34] sm:$0xf]
        %v467 = vld [vmem:[%s452 + $0x38] sm:$0xf]
        %v468 = vld [vmem:[%s452 + $0x3c] sm:$0xf]
        %v469 = vld [vmem:[%s452 + $0x40] sm:$0xf]
        %v470 = vld [vmem:[%s452 + $0x44] sm:$0xf]
        %v471 = vld [vmem:[%s452 + $0x48] sm:$0xf]
        %v472 = vld [vmem:[%s452 + $0x4c] sm:$0xf]
        %v473 = vld [vmem:[%s452 + $0x50] sm:$0xf]
        %v474 = vld [vmem:[%s452 + $0x54] sm:$0xf]
        %v475 = vld [vmem:[%s452 + $0x58] sm:$0xf]
        %v476 = vld [vmem:[%s452 + $0x5c] sm:$0xf]
        %v477 = vld [vmem:[%s452 + $0x60] sm:$0xf]
        %v478 = vld [vmem:[%s452 + $0x64] sm:$0xf]
        %v479 = vld [vmem:[%s452 + $0x68] sm:$0xf]
        %v480 = vld [vmem:[%s452 + $0x6c] sm:$0xf]
        %v481 = vld [vmem:[%s452 + $0x70] sm:$0xf]
        %v482 = vld [vmem:[%s452 + $0x74] sm:$0xf]
        %v483 = vld [vmem:[%s452 + $0x78] sm:$0xf]
        %v484 = vld [vmem:[%s452 + $0x7c] sm:$0xf]
        %s485 = smul.u32 %s32, 8
        %s486 = smul.addr %s485, 4
        %s487 = scalar_lea.vmem %s5, %s486
        %v488 = vld [vmem:[%s487] sm:$0xf]
        %v489 = vld [vmem:[%s487 + $0x4] sm:$0xf]
        %v490 = vld [vmem:[%s487 + $0x8] sm:$0xf]
        %v491 = vld [vmem:[%s487 + $0xc] sm:$0xf]
        %v492 = vld [vmem:[%s487 + $0x10] sm:$0xf]
        %v493 = vld [vmem:[%s487 + $0x14] sm:$0xf]
        %v494 = vld [vmem:[%s487 + $0x18] sm:$0xf]
        %v495 = vld [vmem:[%s487 + $0x1c] sm:$0xf]
        %v496 = vld [vmem:[%s372] sm:$0xff]
        %v497 = vld [vmem:[%s372 + $0x8] sm:$0xff]
        %v498 = vld [vmem:[%s372 + $0x10] sm:$0xff]
        %v499 = vld [vmem:[%s372 + $0x18] sm:$0xff]
        %v500 = vpack.c.bf16 %v381, %v381
        %v509 = vunpack.c.l.b16 %v385
        %v510 = vunpack.c.l.b16 %v386
        %v511 = vunpack.c.l.b16 %v387
        %v512 = vunpack.c.l.b16 %v388
        %v513 = vunpack.c.l.b16 %v389
        %v514 = vunpack.c.l.b16 %v390
        %v515 = vunpack.c.l.b16 %v391
        %v516 = vunpack.c.l.b16 %v392
        %v517 = vpack.c.b16 %v510, %v509
        %v518 = vpack.c.b16 %v512, %v511
        %v519 = vpack.c.b16 %v514, %v513
        %v520 = vpack.c.b16 %v516, %v515
        %vm525 = vcmask 523264
        %v527 = vsel %vm525, %v500, 0
        %529 = vmatprep.subr.bf16.mxu0 0
        %530 = vmatpush1.bf16.msra.mxu0 %v517
        %531 = vmatprep.subr.bf16.mxu0 0
        %532 = vmatpush1.bf16.msra.mxu0 %v518
        %533 = vmatprep.subr.bf16.mxu0 0
        %534 = vmatpush1.bf16.msra.mxu0 %v519
        %535 = vmatprep.subr.bf16.mxu0 0
        %536 = vmatpush1.bf16.msra.mxu0 %v520
        %537 = vmatprep.subr.bf16.mxu0 0
        %538 = vmatpush1.bf16.msra.mxu0 0
        %539 = vmatprep.subr.bf16.mxu0 0
        %540 = vmatpush1.bf16.msra.mxu0 0
        %541 = vmatprep.subr.bf16.mxu0 0
        %542 = vmatpush1.bf16.msra.mxu0 0
        %543 = vmatprep.subr.bf16.mxu0 0
        %544 = vmatpush1.bf16.msra.mxu0 0
        %545 = vmatprep.subr.bf16.mxu0 0
        %546 = vmatpush1.bf16.msra.mxu0 0
        %547 = vmatprep.subr.bf16.mxu0 0
        %548 = vmatpush1.bf16.msra.mxu0 0
        %549 = vmatprep.subr.bf16.mxu0 0
        %550 = vmatpush1.bf16.msra.mxu0 0
        %551 = vmatprep.subr.bf16.mxu0 0
        %552 = vmatpush1.bf16.msra.mxu0 0
        %553 = vmatprep.subr.bf16.mxu0 0
        %554 = vmatpush1.bf16.msra.mxu0 0
        %555 = vmatprep.subr.bf16.mxu0 0
        %556 = vmatpush1.bf16.msra.mxu0 0
        %557 = vmatprep.subr.bf16.mxu0 0
        %558 = vmatpush1.bf16.msra.mxu0 0
        %559 = vmatprep.subr.bf16.mxu0 0
        %560 = vmatpush1.bf16.msra.mxu0 0
        %561 = vmatprep.mubr.bf16.mxu0 0
        %562 = vmatmul.mubr.bf16.gmra.mrb[0].mxu0 %v527
        %v563 = vpop.f32.mrb[0].mxu0
        %v564 = vadd.f32 0.0, %v563
        %v565 = vpop.f32.mrb[0].mxu0
        %v566 = vpop.f32.mrb[0].mxu0
        %v567 = vpop.f32.mrb[0].mxu0
        %568 = vdwg.mxu0
        %v577 = vunpack.c.l.b16 %v393
        %v578 = vunpack.c.l.b16 %v394
        %v579 = vunpack.c.l.b16 %v395
        %v580 = vunpack.c.l.b16 %v396
        %v581 = vunpack.c.l.b16 %v397
        %v582 = vunpack.c.l.b16 %v398
        %v583 = vunpack.c.l.b16 %v399
        %v584 = vunpack.c.l.b16 %v400
        %v585 = vpack.c.b16 %v578, %v577
        %v586 = vpack.c.b16 %v580, %v579
        %v587 = vpack.c.b16 %v582, %v581
        %v588 = vpack.c.b16 %v584, %v583
        %593 = vmatprep.subr.bf16.mxu0 0
        %594 = vmatpush1.bf16.msra.mxu0 %v585
        %595 = vmatprep.subr.bf16.mxu0 0
        %596 = vmatpush1.bf16.msra.mxu0 %v586
        %597 = vmatprep.subr.bf16.mxu0 0
        %598 = vmatpush1.bf16.msra.mxu0 %v587
        %599 = vmatprep.subr.bf16.mxu0 0
        %600 = vmatpush1.bf16.msra.mxu0 %v588
        %601 = vmatprep.subr.bf16.mxu0 0
        %602 = vmatpush1.bf16.msra.mxu0 0
        %603 = vmatprep.subr.bf16.mxu0 0
        %604 = vmatpush1.bf16.msra.mxu0 0
        %605 = vmatprep.subr.bf16.mxu0 0
        %606 = vmatpush1.bf16.msra.mxu0 0
        %607 = vmatprep.subr.bf16.mxu0 0
        %608 = vmatpush1.bf16.msra.mxu0 0
        %609 = vmatprep.subr.bf16.mxu0 0
        %610 = vmatpush1.bf16.msra.mxu0 0
        %611 = vmatprep.subr.bf16.mxu0 0
        %612 = vmatpush1.bf16.msra.mxu0 0
        %613 = vmatprep.subr.bf16.mxu0 0
        %614 = vmatpush1.bf16.msra.mxu0 0
        %615 = vmatprep.subr.bf16.mxu0 0
        %616 = vmatpush1.bf16.msra.mxu0 0
        %617 = vmatprep.subr.bf16.mxu0 0
        %618 = vmatpush1.bf16.msra.mxu0 0
        %619 = vmatprep.subr.bf16.mxu0 0
        %620 = vmatpush1.bf16.msra.mxu0 0
        %621 = vmatprep.subr.bf16.mxu0 0
        %622 = vmatpush1.bf16.msra.mxu0 0
        %623 = vmatprep.subr.bf16.mxu0 0
        %624 = vmatpush1.bf16.msra.mxu0 0
        %625 = vmatprep.mubr.bf16.mxu0 0
        %626 = vmatmul.mubr.bf16.gmra.mrb[0].mxu0 %v527
        %v627 = vpop.f32.mrb[0].mxu0
        %v628 = vadd.f32 0.0, %v627
        %v629 = vpop.f32.mrb[0].mxu0
        %v630 = vpop.f32.mrb[0].mxu0
        %v631 = vpop.f32.mrb[0].mxu0
        %632 = vdwg.mxu0
        %v641 = vunpack.c.l.b16 %v401
        %v642 = vunpack.c.l.b16 %v402
        %v643 = vunpack.c.l.b16 %v403
        %v644 = vunpack.c.l.b16 %v404
        %v645 = vunpack.c.l.b16 %v405
        %v646 = vunpack.c.l.b16 %v406
        %v647 = vunpack.c.l.b16 %v407
        %v648 = vunpack.c.l.b16 %v408
        %v649 = vpack.c.b16 %v642, %v641
        %v650 = vpack.c.b16 %v644, %v643
        %v651 = vpack.c.b16 %v646, %v645
        %v652 = vpack.c.b16 %v648, %v647
        %657 = vmatprep.subr.bf16.mxu0 0
        %658 = vmatpush1.bf16.msra.mxu0 %v649
        %659 = vmatprep.subr.bf16.mxu0 0
        %660 = vmatpush1.bf16.msra.mxu0 %v650
        %661 = vmatprep.subr.bf16.mxu0 0
        %662 = vmatpush1.bf16.msra.mxu0 %v651
        %663 = vmatprep.subr.bf16.mxu0 0
        %664 = vmatpush1.bf16.msra.mxu0 %v652
        %665 = vmatprep.subr.bf16.mxu0 0
        %666 = vmatpush1.bf16.msra.mxu0 0
        %667 = vmatprep.subr.bf16.mxu0 0
        %668 = vmatpush1.bf16.msra.mxu0 0
        %669 = vmatprep.subr.bf16.mxu0 0
        %670 = vmatpush1.bf16.msra.mxu0 0
        %671 = vmatprep.subr.bf16.mxu0 0
        %672 = vmatpush1.bf16.msra.mxu0 0
        %673 = vmatprep.subr.bf16.mxu0 0
        %674 = vmatpush1.bf16.msra.mxu0 0
        %675 = vmatprep.subr.bf16.mxu0 0
        %676 = vmatpush1.bf16.msra.mxu0 0
        %677 = vmatprep.subr.bf16.mxu0 0
        %678 = vmatpush1.bf16.msra.mxu0 0
        %679 = vmatprep.subr.bf16.mxu0 0
        %680 = vmatpush1.bf16.msra.mxu0 0
        %681 = vmatprep.subr.bf16.mxu0 0
        %682 = vmatpush1.bf16.msra.mxu0 0
        %683 = vmatprep.subr.bf16.mxu0 0
        %684 = vmatpush1.bf16.msra.mxu0 0
        %685 = vmatprep.subr.bf16.mxu0 0
        %686 = vmatpush1.bf16.msra.mxu0 0
        %687 = vmatprep.subr.bf16.mxu0 0
        %688 = vmatpush1.bf16.msra.mxu0 0
        %689 = vmatprep.mubr.bf16.mxu0 0
        %690 = vmatmul.mubr.bf16.gmra.mrb[0].mxu0 %v527
        %v691 = vpop.f32.mrb[0].mxu0
        %v692 = vadd.f32 0.0, %v691
        %v693 = vpop.f32.mrb[0].mxu0
        %v694 = vpop.f32.mrb[0].mxu0
        %v695 = vpop.f32.mrb[0].mxu0
        %696 = vdwg.mxu0
        %v705 = vunpack.c.l.b16 %v409
        %v706 = vunpack.c.l.b16 %v410
        %v707 = vunpack.c.l.b16 %v411
        %v708 = vunpack.c.l.b16 %v412
        %v709 = vunpack.c.l.b16 %v413
        %v710 = vunpack.c.l.b16 %v414
        %v711 = vunpack.c.l.b16 %v415
        %v712 = vunpack.c.l.b16 %v416
        %v713 = vpack.c.b16 %v706, %v705
        %v714 = vpack.c.b16 %v708, %v707
        %v715 = vpack.c.b16 %v710, %v709
        %v716 = vpack.c.b16 %v712, %v711
        %721 = vmatprep.subr.bf16.mxu0 0
        %722 = vmatpush1.bf16.msra.mxu0 %v713
        %723 = vmatprep.subr.bf16.mxu0 0
        %724 = vmatpush1.bf16.msra.mxu0 %v714
        %725 = vmatprep.subr.bf16.mxu0 0
        %726 = vmatpush1.bf16.msra.mxu0 %v715
        %727 = vmatprep.subr.bf16.mxu0 0
        %728 = vmatpush1.bf16.msra.mxu0 %v716
        %729 = vmatprep.subr.bf16.mxu0 0
        %730 = vmatpush1.bf16.msra.mxu0 0
        %731 = vmatprep.subr.bf16.mxu0 0
        %732 = vmatpush1.bf16.msra.mxu0 0
        %733 = vmatprep.subr.bf16.mxu0 0
        %734 = vmatpush1.bf16.msra.mxu0 0
        %735 = vmatprep.subr.bf16.mxu0 0
        %736 = vmatpush1.bf16.msra.mxu0 0
        %737 = vmatprep.subr.bf16.mxu0 0
        %738 = vmatpush1.bf16.msra.mxu0 0
        %739 = vmatprep.subr.bf16.mxu0 0
        %740 = vmatpush1.bf16.msra.mxu0 0
        %741 = vmatprep.subr.bf16.mxu0 0
        %742 = vmatpush1.bf16.msra.mxu0 0
        %743 = vmatprep.subr.bf16.mxu0 0
        %744 = vmatpush1.bf16.msra.mxu0 0
        %745 = vmatprep.subr.bf16.mxu0 0
        %746 = vmatpush1.bf16.msra.mxu0 0
        %747 = vmatprep.subr.bf16.mxu0 0
        %748 = vmatpush1.bf16.msra.mxu0 0
        %749 = vmatprep.subr.bf16.mxu0 0
        %750 = vmatpush1.bf16.msra.mxu0 0
        %751 = vmatprep.subr.bf16.mxu0 0
        %752 = vmatpush1.bf16.msra.mxu0 0
        %753 = vmatprep.mubr.bf16.mxu0 0
        %754 = vmatmul.mubr.bf16.gmra.mrb[0].mxu0 %v527
        %v755 = vpop.f32.mrb[0].mxu0
        %v756 = vadd.f32 0.0, %v755
        %v757 = vpop.f32.mrb[0].mxu0
        %v758 = vpop.f32.mrb[0].mxu0
        %v759 = vpop.f32.mrb[0].mxu0
        %760 = vdwg.mxu0
        %v769 = vunpack.c.l.b16 %v419
        %v770 = vunpack.c.l.b16 %v420
        %v771 = vunpack.c.l.b16 %v421
        %v772 = vunpack.c.l.b16 %v422
        %v773 = vunpack.c.l.b16 %v423
        %v774 = vunpack.c.l.b16 %v424
        %v775 = vunpack.c.l.b16 %v425
        %v776 = vunpack.c.l.b16 %v426
        %v777 = vpack.c.b16 %v770, %v769
        %v778 = vpack.c.b16 %v772, %v771
        %v779 = vpack.c.b16 %v774, %v773
        %v780 = vpack.c.b16 %v776, %v775
        %785 = vmatprep.subr.bf16.mxu0 0
        %786 = vmatpush1.bf16.msra.mxu0 %v777
        %787 = vmatprep.subr.bf16.mxu0 0
        %788 = vmatpush1.bf16.msra.mxu0 %v778
        %789 = vmatprep.subr.bf16.mxu0 0
        %790 = vmatpush1.bf16.msra.mxu0 %v779
        %791 = vmatprep.subr.bf16.mxu0 0
        %792 = vmatpush1.bf16.msra.mxu0 %v780
        %793 = vmatprep.subr.bf16.mxu0 0
        %794 = vmatpush1.bf16.msra.mxu0 0
        %795 = vmatprep.subr.bf16.mxu0 0
        %796 = vmatpush1.bf16.msra.mxu0 0
        %797 = vmatprep.subr.bf16.mxu0 0
        %798 = vmatpush1.bf16.msra.mxu0 0
        %799 = vmatprep.subr.bf16.mxu0 0
        %800 = vmatpush1.bf16.msra.mxu0 0
        %801 = vmatprep.subr.bf16.mxu0 0
        %802 = vmatpush1.bf16.msra.mxu0 0
        %803 = vmatprep.subr.bf16.mxu0 0
        %804 = vmatpush1.bf16.msra.mxu0 0
        %805 = vmatprep.subr.bf16.mxu0 0
        %806 = vmatpush1.bf16.msra.mxu0 0
        %807 = vmatprep.subr.bf16.mxu0 0
        %808 = vmatpush1.bf16.msra.mxu0 0
        %809 = vmatprep.subr.bf16.mxu0 0
        %810 = vmatpush1.bf16.msra.mxu0 0
        %811 = vmatprep.subr.bf16.mxu0 0
        %812 = vmatpush1.bf16.msra.mxu0 0
        %813 = vmatprep.subr.bf16.mxu0 0
        %814 = vmatpush1.bf16.msra.mxu0 0
        %815 = vmatprep.subr.bf16.mxu0 0
        %816 = vmatpush1.bf16.msra.mxu0 0
        %817 = vmatprep.mubr.bf16.mxu0 0
        %818 = vmatmul.mubr.bf16.gmra.mrb[0].mxu0 %v527
        %v819 = vpop.f32.mrb[0].mxu0
        %v820 = vadd.f32 0.0, %v819
        %v821 = vpop.f32.mrb[0].mxu0
        %v822 = vpop.f32.mrb[0].mxu0
        %v823 = vpop.f32.mrb[0].mxu0
        %824 = vdwg.mxu0
        %v833 = vunpack.c.l.b16 %v427
        %v834 = vunpack.c.l.b16 %v428
        %v835 = vunpack.c.l.b16 %v429
        %v836 = vunpack.c.l.b16 %v430
        %v837 = vunpack.c.l.b16 %v431
        %v838 = vunpack.c.l.b16 %v432
        %v839 = vunpack.c.l.b16 %v433
        %v840 = vunpack.c.l.b16 %v434
        %v841 = vpack.c.b16 %v834, %v833
        %v842 = vpack.c.b16 %v836, %v835
        %v843 = vpack.c.b16 %v838, %v837
        %v844 = vpack.c.b16 %v840, %v839
        %849 = vmatprep.subr.bf16.mxu0 0
        %850 = vmatpush1.bf16.msra.mxu0 %v841
        %851 = vmatprep.subr.bf16.mxu0 0
        %852 = vmatpush1.bf16.msra.mxu0 %v842
        %853 = vmatprep.subr.bf16.mxu0 0
        %854 = vmatpush1.bf16.msra.mxu0 %v843
        %855 = vmatprep.subr.bf16.mxu0 0
        %856 = vmatpush1.bf16.msra.mxu0 %v844
        %857 = vmatprep.subr.bf16.mxu0 0
        %858 = vmatpush1.bf16.msra.mxu0 0
        %859 = vmatprep.subr.bf16.mxu0 0
        %860 = vmatpush1.bf16.msra.mxu0 0
        %861 = vmatprep.subr.bf16.mxu0 0
        %862 = vmatpush1.bf16.msra.mxu0 0
        %863 = vmatprep.subr.bf16.mxu0 0
        %864 = vmatpush1.bf16.msra.mxu0 0
        %865 = vmatprep.subr.bf16.mxu0 0
        %866 = vmatpush1.bf16.msra.mxu0 0
        %867 = vmatprep.subr.bf16.mxu0 0
        %868 = vmatpush1.bf16.msra.mxu0 0
        %869 = vmatprep.subr.bf16.mxu0 0
        %870 = vmatpush1.bf16.msra.mxu0 0
        %871 = vmatprep.subr.bf16.mxu0 0
        %872 = vmatpush1.bf16.msra.mxu0 0
        %873 = vmatprep.subr.bf16.mxu0 0
        %874 = vmatpush1.bf16.msra.mxu0 0
        %875 = vmatprep.subr.bf16.mxu0 0
        %876 = vmatpush1.bf16.msra.mxu0 0
        %877 = vmatprep.subr.bf16.mxu0 0
        %878 = vmatpush1.bf16.msra.mxu0 0
        %879 = vmatprep.subr.bf16.mxu0 0
        %880 = vmatpush1.bf16.msra.mxu0 0
        %881 = vmatprep.mubr.bf16.mxu0 0
        %882 = vmatmul.mubr.bf16.gmra.mrb[0].mxu0 %v527
        %v883 = vpop.f32.mrb[0].mxu0
        %v884 = vadd.f32 0.0, %v883
        %v885 = vpop.f32.mrb[0].mxu0
        %v886 = vpop.f32.mrb[0].mxu0
        %v887 = vpop.f32.mrb[0].mxu0
        %888 = vdwg.mxu0
        %v897 = vunpack.c.l.b16 %v435
        %v898 = vunpack.c.l.b16 %v436
        %v899 = vunpack.c.l.b16 %v437
        %v900 = vunpack.c.l.b16 %v438
        %v901 = vunpack.c.l.b16 %v439
        %v902 = vunpack.c.l.b16 %v440
        %v903 = vunpack.c.l.b16 %v441
        %v904 = vunpack.c.l.b16 %v442
        %v905 = vpack.c.b16 %v898, %v897
        %v906 = vpack.c.b16 %v900, %v899
        %v907 = vpack.c.b16 %v902, %v901
        %v908 = vpack.c.b16 %v904, %v903
        %913 = vmatprep.subr.bf16.mxu0 0
        %914 = vmatpush1.bf16.msra.mxu0 %v905
        %915 = vmatprep.subr.bf16.mxu0 0
        %916 = vmatpush1.bf16.msra.mxu0 %v906
        %917 = vmatprep.subr.bf16.mxu0 0
        %918 = vmatpush1.bf16.msra.mxu0 %v907
        %919 = vmatprep.subr.bf16.mxu0 0
        %920 = vmatpush1.bf16.msra.mxu0 %v908
        %921 = vmatprep.subr.bf16.mxu0 0
        %922 = vmatpush1.bf16.msra.mxu0 0
        %923 = vmatprep.subr.bf16.mxu0 0
        %924 = vmatpush1.bf16.msra.mxu0 0
        %925 = vmatprep.subr.bf16.mxu0 0
        %926 = vmatpush1.bf16.msra.mxu0 0
        %927 = vmatprep.subr.bf16.mxu0 0
        %928 = vmatpush1.bf16.msra.mxu0 0
        %929 = vmatprep.subr.bf16.mxu0 0
        %930 = vmatpush1.bf16.msra.mxu0 0
        %931 = vmatprep.subr.bf16.mxu0 0
        %932 = vmatpush1.bf16.msra.mxu0 0
        %933 = vmatprep.subr.bf16.mxu0 0
        %934 = vmatpush1.bf16.msra.mxu0 0
        %935 = vmatprep.subr.bf16.mxu0 0
        %936 = vmatpush1.bf16.msra.mxu0 0
        %937 = vmatprep.subr.bf16.mxu0 0
        %938 = vmatpush1.bf16.msra.mxu0 0
        %939 = vmatprep.subr.bf16.mxu0 0
        %940 = vmatpush1.bf16.msra.mxu0 0
        %941 = vmatprep.subr.bf16.mxu0 0
        %942 = vmatpush1.bf16.msra.mxu0 0
        %943 = vmatprep.subr.bf16.mxu0 0
        %944 = vmatpush1.bf16.msra.mxu0 0
        %945 = vmatprep.mubr.bf16.mxu0 0
        %946 = vmatmul.mubr.bf16.gmra.mrb[0].mxu0 %v527
        %v947 = vpop.f32.mrb[0].mxu0
        %v948 = vadd.f32 0.0, %v947
        %v949 = vpop.f32.mrb[0].mxu0
        %v950 = vpop.f32.mrb[0].mxu0
        %v951 = vpop.f32.mrb[0].mxu0
        %952 = vdwg.mxu0
        %v961 = vunpack.c.l.b16 %v443
        %v962 = vunpack.c.l.b16 %v444
        %v963 = vunpack.c.l.b16 %v445
        %v964 = vunpack.c.l.b16 %v446
        %v965 = vunpack.c.l.b16 %v447
        %v966 = vunpack.c.l.b16 %v448
        %v967 = vunpack.c.l.b16 %v449
        %v968 = vunpack.c.l.b16 %v450
        %v969 = vpack.c.b16 %v962, %v961
        %v970 = vpack.c.b16 %v964, %v963
        %v971 = vpack.c.b16 %v966, %v965
        %v972 = vpack.c.b16 %v968, %v967
        %977 = vmatprep.subr.bf16.mxu0 0
        %978 = vmatpush1.bf16.msra.mxu0 %v969
        %979 = vmatprep.subr.bf16.mxu0 0
        %980 = vmatpush1.bf16.msra.mxu0 %v970
        %981 = vmatprep.subr.bf16.mxu0 0
        %982 = vmatpush1.bf16.msra.mxu0 %v971
        %983 = vmatprep.subr.bf16.mxu0 0
        %984 = vmatpush1.bf16.msra.mxu0 %v972
        %985 = vmatprep.subr.bf16.mxu0 0
        %986 = vmatpush1.bf16.msra.mxu0 0
        %987 = vmatprep.subr.bf16.mxu0 0
        %988 = vmatpush1.bf16.msra.mxu0 0
        %989 = vmatprep.subr.bf16.mxu0 0
        %990 = vmatpush1.bf16.msra.mxu0 0
        %991 = vmatprep.subr.bf16.mxu0 0
        %992 = vmatpush1.bf16.msra.mxu0 0
        %993 = vmatprep.subr.bf16.mxu0 0
        %994 = vmatpush1.bf16.msra.mxu0 0
        %995 = vmatprep.subr.bf16.mxu0 0
        %996 = vmatpush1.bf16.msra.mxu0 0
        %997 = vmatprep.subr.bf16.mxu0 0
        %998 = vmatpush1.bf16.msra.mxu0 0
        %999 = vmatprep.subr.bf16.mxu0 0
        %1000 = vmatpush1.bf16.msra.mxu0 0
        %1001 = vmatprep.subr.bf16.mxu0 0
        %1002 = vmatpush1.bf16.msra.mxu0 0
        %1003 = vmatprep.subr.bf16.mxu0 0
        %1004 = vmatpush1.bf16.msra.mxu0 0
        %1005 = vmatprep.subr.bf16.mxu0 0
        %1006 = vmatpush1.bf16.msra.mxu0 0
        %1007 = vmatprep.subr.bf16.mxu0 0
        %1008 = vmatpush1.bf16.msra.mxu0 0
        %1009 = vmatprep.mubr.bf16.mxu0 0
        %1010 = vmatmul.mubr.bf16.gmra.mrb[0].mxu0 %v527
        %v1011 = vpop.f32.mrb[0].mxu0
        %v1012 = vadd.f32 0.0, %v1011
        %v1013 = vpop.f32.mrb[0].mxu0
        %v1014 = vpop.f32.mrb[0].mxu0
        %v1015 = vpop.f32.mrb[0].mxu0
        %1016 = vdwg.mxu0
        %v1025 = vunpack.c.l.b16 %v453
        %v1026 = vunpack.c.l.b16 %v454
        %v1027 = vunpack.c.l.b16 %v455
        %v1028 = vunpack.c.l.b16 %v456
        %v1029 = vunpack.c.l.b16 %v457
        %v1030 = vunpack.c.l.b16 %v458
        %v1031 = vunpack.c.l.b16 %v459
        %v1032 = vunpack.c.l.b16 %v460
        %v1033 = vpack.c.b16 %v1026, %v1025
        %v1034 = vpack.c.b16 %v1028, %v1027
        %v1035 = vpack.c.b16 %v1030, %v1029
        %v1036 = vpack.c.b16 %v1032, %v1031
        %1041 = vmatprep.subr.bf16.mxu0 0
        %1042 = vmatpush1.bf16.msra.mxu0 %v1033
        %1043 = vmatprep.subr.bf16.mxu0 0
        %1044 = vmatpush1.bf16.msra.mxu0 %v1034
        %1045 = vmatprep.subr.bf16.mxu0 0
        %1046 = vmatpush1.bf16.msra.mxu0 %v1035
        %1047 = vmatprep.subr.bf16.mxu0 0
        %1048 = vmatpush1.bf16.msra.mxu0 %v1036
        %1049 = vmatprep.subr.bf16.mxu0 0
        %1050 = vmatpush1.bf16.msra.mxu0 0
        %1051 = vmatprep.subr.bf16.mxu0 0
        %1052 = vmatpush1.bf16.msra.mxu0 0
        %1053 = vmatprep.subr.bf16.mxu0 0
        %1054 = vmatpush1.bf16.msra.mxu0 0
        %1055 = vmatprep.subr.bf16.mxu0 0
        %1056 = vmatpush1.bf16.msra.mxu0 0
        %1057 = vmatprep.subr.bf16.mxu0 0
        %1058 = vmatpush1.bf16.msra.mxu0 0
        %1059 = vmatprep.subr.bf16.mxu0 0
        %1060 = vmatpush1.bf16.msra.mxu0 0
        %1061 = vmatprep.subr.bf16.mxu0 0
        %1062 = vmatpush1.bf16.msra.mxu0 0
        %1063 = vmatprep.subr.bf16.mxu0 0
        %1064 = vmatpush1.bf16.msra.mxu0 0
        %1065 = vmatprep.subr.bf16.mxu0 0
        %1066 = vmatpush1.bf16.msra.mxu0 0
        %1067 = vmatprep.subr.bf16.mxu0 0
        %1068 = vmatpush1.bf16.msra.mxu0 0
        %1069 = vmatprep.subr.bf16.mxu0 0
        %1070 = vmatpush1.bf16.msra.mxu0 0
        %1071 = vmatprep.subr.bf16.mxu0 0
        %1072 = vmatpush1.bf16.msra.mxu0 0
        %1073 = vmatprep.mubr.bf16.mxu0 0
        %1074 = vmatmul.mubr.bf16.gmra.mrb[0].mxu0 %v527
        %v1075 = vpop.f32.mrb[0].mxu0
        %v1076 = vadd.f32 0.0, %v1075
        %v1077 = vpop.f32.mrb[0].mxu0
        %v1078 = vpop.f32.mrb[0].mxu0
        %v1079 = vpop.f32.mrb[0].mxu0
        %1080 = vdwg.mxu0
        %v1089 = vunpack.c.l.b16 %v461
        %v1090 = vunpack.c.l.b16 %v462
        %v1091 = vunpack.c.l.b16 %v463
        %v1092 = vunpack.c.l.b16 %v464
        %v1093 = vunpack.c.l.b16 %v465
        %v1094 = vunpack.c.l.b16 %v466
        %v1095 = vunpack.c.l.b16 %v467
        %v1096 = vunpack.c.l.b16 %v468
        %v1097 = vpack.c.b16 %v1090, %v1089
        %v1098 = vpack.c.b16 %v1092, %v1091
        %v1099 = vpack.c.b16 %v1094, %v1093
        %v1100 = vpack.c.b16 %v1096, %v1095
        %1105 = vmatprep.subr.bf16.mxu0 0
        %1106 = vmatpush1.bf16.msra.mxu0 %v1097
        %1107 = vmatprep.subr.bf16.mxu0 0
        %1108 = vmatpush1.bf16.msra.mxu0 %v1098
        %1109 = vmatprep.subr.bf16.mxu0 0
        %1110 = vmatpush1.bf16.msra.mxu0 %v1099
        %1111 = vmatprep.subr.bf16.mxu0 0
        %1112 = vmatpush1.bf16.msra.mxu0 %v1100
        %1113 = vmatprep.subr.bf16.mxu0 0
        %1114 = vmatpush1.bf16.msra.mxu0 0
        %1115 = vmatprep.subr.bf16.mxu0 0
        %1116 = vmatpush1.bf16.msra.mxu0 0
        %1117 = vmatprep.subr.bf16.mxu0 0
        %1118 = vmatpush1.bf16.msra.mxu0 0
        %1119 = vmatprep.subr.bf16.mxu0 0
        %1120 = vmatpush1.bf16.msra.mxu0 0
        %1121 = vmatprep.subr.bf16.mxu0 0
        %1122 = vmatpush1.bf16.msra.mxu0 0
        %1123 = vmatprep.subr.bf16.mxu0 0
        %1124 = vmatpush1.bf16.msra.mxu0 0
        %1125 = vmatprep.subr.bf16.mxu0 0
        %1126 = vmatpush1.bf16.msra.mxu0 0
        %1127 = vmatprep.subr.bf16.mxu0 0
        %1128 = vmatpush1.bf16.msra.mxu0 0
        %1129 = vmatprep.subr.bf16.mxu0 0
        %1130 = vmatpush1.bf16.msra.mxu0 0
        %1131 = vmatprep.subr.bf16.mxu0 0
        %1132 = vmatpush1.bf16.msra.mxu0 0
        %1133 = vmatprep.subr.bf16.mxu0 0
        %1134 = vmatpush1.bf16.msra.mxu0 0
        %1135 = vmatprep.subr.bf16.mxu0 0
        %1136 = vmatpush1.bf16.msra.mxu0 0
        %1137 = vmatprep.mubr.bf16.mxu0 0
        %1138 = vmatmul.mubr.bf16.gmra.mrb[0].mxu0 %v527
        %v1139 = vpop.f32.mrb[0].mxu0
        %v1140 = vadd.f32 0.0, %v1139
        %v1141 = vpop.f32.mrb[0].mxu0
        %v1142 = vpop.f32.mrb[0].mxu0
        %v1143 = vpop.f32.mrb[0].mxu0
        %1144 = vdwg.mxu0
        %v1153 = vunpack.c.l.b16 %v469
        %v1154 = vunpack.c.l.b16 %v470
        %v1155 = vunpack.c.l.b16 %v471
        %v1156 = vunpack.c.l.b16 %v472
        %v1157 = vunpack.c.l.b16 %v473
        %v1158 = vunpack.c.l.b16 %v474
        %v1159 = vunpack.c.l.b16 %v475
        %v1160 = vunpack.c.l.b16 %v476
        %v1161 = vpack.c.b16 %v1154, %v1153
        %v1162 = vpack.c.b16 %v1156, %v1155
        %v1163 = vpack.c.b16 %v1158, %v1157
        %v1164 = vpack.c.b16 %v1160, %v1159
        %1169 = vmatprep.subr.bf16.mxu0 0
        %1170 = vmatpush1.bf16.msra.mxu0 %v1161
        %1171 = vmatprep.subr.bf16.mxu0 0
        %1172 = vmatpush1.bf16.msra.mxu0 %v1162
        %1173 = vmatprep.subr.bf16.mxu0 0
        %1174 = vmatpush1.bf16.msra.mxu0 %v1163
        %1175 = vmatprep.subr.bf16.mxu0 0
        %1176 = vmatpush1.bf16.msra.mxu0 %v1164
        %1177 = vmatprep.subr.bf16.mxu0 0
        %1178 = vmatpush1.bf16.msra.mxu0 0
        %1179 = vmatprep.subr.bf16.mxu0 0
        %1180 = vmatpush1.bf16.msra.mxu0 0
        %1181 = vmatprep.subr.bf16.mxu0 0
        %1182 = vmatpush1.bf16.msra.mxu0 0
        %1183 = vmatprep.subr.bf16.mxu0 0
        %1184 = vmatpush1.bf16.msra.mxu0 0
        %1185 = vmatprep.subr.bf16.mxu0 0
        %1186 = vmatpush1.bf16.msra.mxu0 0
        %1187 = vmatprep.subr.bf16.mxu0 0
        %1188 = vmatpush1.bf16.msra.mxu0 0
        %1189 = vmatprep.subr.bf16.mxu0 0
        %1190 = vmatpush1.bf16.msra.mxu0 0
        %1191 = vmatprep.subr.bf16.mxu0 0
        %1192 = vmatpush1.bf16.msra.mxu0 0
        %1193 = vmatprep.subr.bf16.mxu0 0
        %1194 = vmatpush1.bf16.msra.mxu0 0
        %1195 = vmatprep.subr.bf16.mxu0 0
        %1196 = vmatpush1.bf16.msra.mxu0 0
        %1197 = vmatprep.subr.bf16.mxu0 0
        %1198 = vmatpush1.bf16.msra.mxu0 0
        %1199 = vmatprep.subr.bf16.mxu0 0
        %1200 = vmatpush1.bf16.msra.mxu0 0
        %1201 = vmatprep.mubr.bf16.mxu0 0
        %1202 = vmatmul.mubr.bf16.gmra.mrb[0].mxu0 %v527
        %v1203 = vpop.f32.mrb[0].mxu0
        %v1204 = vadd.f32 0.0, %v1203
        %v1205 = vpop.f32.mrb[0].mxu0
        %v1206 = vpop.f32.mrb[0].mxu0
        %v1207 = vpop.f32.mrb[0].mxu0
        %1208 = vdwg.mxu0
        %v1217 = vunpack.c.l.b16 %v477
        %v1218 = vunpack.c.l.b16 %v478
        %v1219 = vunpack.c.l.b16 %v479
        %v1220 = vunpack.c.l.b16 %v480
        %v1221 = vunpack.c.l.b16 %v481
        %v1222 = vunpack.c.l.b16 %v482
        %v1223 = vunpack.c.l.b16 %v483
        %v1224 = vunpack.c.l.b16 %v484
        %v1225 = vpack.c.b16 %v1218, %v1217
        %v1226 = vpack.c.b16 %v1220, %v1219
        %v1227 = vpack.c.b16 %v1222, %v1221
        %v1228 = vpack.c.b16 %v1224, %v1223
        %1233 = vmatprep.subr.bf16.mxu0 0
        %1234 = vmatpush1.bf16.msra.mxu0 %v1225
        %1235 = vmatprep.subr.bf16.mxu0 0
        %1236 = vmatpush1.bf16.msra.mxu0 %v1226
        %1237 = vmatprep.subr.bf16.mxu0 0
        %1238 = vmatpush1.bf16.msra.mxu0 %v1227
        %1239 = vmatprep.subr.bf16.mxu0 0
        %1240 = vmatpush1.bf16.msra.mxu0 %v1228
        %1241 = vmatprep.subr.bf16.mxu0 0
        %1242 = vmatpush1.bf16.msra.mxu0 0
        %1243 = vmatprep.subr.bf16.mxu0 0
        %1244 = vmatpush1.bf16.msra.mxu0 0
        %1245 = vmatprep.subr.bf16.mxu0 0
        %1246 = vmatpush1.bf16.msra.mxu0 0
        %1247 = vmatprep.subr.bf16.mxu0 0
        %1248 = vmatpush1.bf16.msra.mxu0 0
        %1249 = vmatprep.subr.bf16.mxu0 0
        %1250 = vmatpush1.bf16.msra.mxu0 0
        %1251 = vmatprep.subr.bf16.mxu0 0
        %1252 = vmatpush1.bf16.msra.mxu0 0
        %1253 = vmatprep.subr.bf16.mxu0 0
        %1254 = vmatpush1.bf16.msra.mxu0 0
        %1255 = vmatprep.subr.bf16.mxu0 0
        %1256 = vmatpush1.bf16.msra.mxu0 0
        %1257 = vmatprep.subr.bf16.mxu0 0
        %1258 = vmatpush1.bf16.msra.mxu0 0
        %1259 = vmatprep.subr.bf16.mxu0 0
        %1260 = vmatpush1.bf16.msra.mxu0 0
        %1261 = vmatprep.subr.bf16.mxu0 0
        %1262 = vmatpush1.bf16.msra.mxu0 0
        %1263 = vmatprep.subr.bf16.mxu0 0
        %1264 = vmatpush1.bf16.msra.mxu0 0
        %1265 = vmatprep.mubr.bf16.mxu0 0
        %1266 = vmatmul.mubr.bf16.gmra.mrb[0].mxu0 %v527
        %v1267 = vpop.f32.mrb[0].mxu0
        %v1268 = vadd.f32 0.0, %v1267
        %v1269 = vpop.f32.mrb[0].mxu0
        %v1270 = vpop.f32.mrb[0].mxu0
        %v1271 = vpop.f32.mrb[0].mxu0
        %1272 = vdwg.mxu0
        %v1273 = vpack.c.bf16 %v564, %v564
        %v1274 = vpack.c.bf16 %v628, %v628
        %v1275 = vpack.c.bf16 %v692, %v692
        %v1276 = vpack.c.bf16 %v756, %v756
        %v1277 = vpack.c.bf16 %v820, %v820
        %v1278 = vpack.c.bf16 %v884, %v884
        %v1279 = vpack.c.bf16 %v948, %v948
        %v1280 = vpack.c.bf16 %v1012, %v1012
        %vm1281 = vcmask 130048
        %v1283 = vsel %vm1281, %v1273, 0
        %v1286 = vsel %vm1281, %v1277, 0
        %1288 = vmatprep.subr.bf16.mxu0 0
        %1289 = vmatpush1.bf16.xpose.msra.mxu0 %v1286
        %1290 = vmatprep.subr.bf16.mxu0 0
        %1291 = vmatpush1.bf16.xpose.msra.mxu0 0
        %1292 = vmatprep.subr.bf16.mxu0 0
        %1293 = vmatpush1.bf16.xpose.msra.mxu0 0
        %1294 = vmatprep.subr.bf16.mxu0 0
        %1295 = vmatpush1.bf16.xpose.msra.mxu0 0
        %1296 = vmatprep.subr.bf16.mxu0 0
        %1297 = vmatpush1.bf16.xpose.msra.mxu0 0
        %1298 = vmatprep.subr.bf16.mxu0 0
        %1299 = vmatpush1.bf16.xpose.msra.mxu0 0
        %1300 = vmatprep.subr.bf16.mxu0 0
        %1301 = vmatpush1.bf16.xpose.msra.mxu0 0
        %1302 = vmatprep.subr.bf16.mxu0 0
        %1303 = vmatpush1.bf16.xpose.msra.mxu0 0
        %1304 = vmatprep.subr.bf16.mxu0 0
        %1305 = vmatpush1.bf16.xpose.msra.mxu0 0
        %1306 = vmatprep.subr.bf16.mxu0 0
        %1307 = vmatpush1.bf16.xpose.msra.mxu0 0
        %1308 = vmatprep.subr.bf16.mxu0 0
        %1309 = vmatpush1.bf16.xpose.msra.mxu0 0
        %1310 = vmatprep.subr.bf16.mxu0 0
        %1311 = vmatpush1.bf16.xpose.msra.mxu0 0
        %1312 = vmatprep.subr.bf16.mxu0 0
        %1313 = vmatpush1.bf16.xpose.msra.mxu0 0
        %1314 = vmatprep.subr.bf16.mxu0 0
        %1315 = vmatpush1.bf16.xpose.msra.mxu0 0
        %1316 = vmatprep.subr.bf16.mxu0 0
        %1317 = vmatpush1.bf16.xpose.msra.mxu0 0
        %1318 = vmatprep.subr.bf16.mxu0 0
        %1319 = vmatpush1.bf16.xpose.msra.mxu0 0
        %1320 = vmatprep.mubr.bf16.mxu0 0
        %1321 = vmatmul.mubr.bf16.gmra.mrb[0].mxu0 %v1283
        %v1322 = vpop.f32.mrb[0].mxu0
        %v1323 = vadd.f32 0.0, %v1322
        %v1324 = vpop.f32.mrb[0].mxu0
        %v1325 = vpop.f32.mrb[0].mxu0
        %v1326 = vpop.f32.mrb[0].mxu0
        %1327 = vdwg.mxu0
        %v1329 = vsel %vm1281, %v1274, 0
        %v1332 = vsel %vm1281, %v1278, 0
        %1334 = vmatprep.subr.bf16.mxu0 0
        %1335 = vmatpush1.bf16.xpose.msra.mxu0 %v1332
        %1336 = vmatprep.subr.bf16.mxu0 0
        %1337 = vmatpush1.bf16.xpose.msra.mxu0 0
        %1338 = vmatprep.subr.bf16.mxu0 0
        %1339 = vmatpush1.bf16.xpose.msra.mxu0 0
        %1340 = vmatprep.subr.bf16.mxu0 0
        %1341 = vmatpush1.bf16.xpose.msra.mxu0 0
        %1342 = vmatprep.subr.bf16.mxu0 0
        %1343 = vmatpush1.bf16.xpose.msra.mxu0 0
        %1344 = vmatprep.subr.bf16.mxu0 0
        %1345 = vmatpush1.bf16.xpose.msra.mxu0 0
        %1346 = vmatprep.subr.bf16.mxu0 0
        %1347 = vmatpush1.bf16.xpose.msra.mxu0 0
        %1348 = vmatprep.subr.bf16.mxu0 0
        %1349 = vmatpush1.bf16.xpose.msra.mxu0 0
        %1350 = vmatprep.subr.bf16.mxu0 0
        %1351 = vmatpush1.bf16.xpose.msra.mxu0 0
        %1352 = vmatprep.subr.bf16.mxu0 0
        %1353 = vmatpush1.bf16.xpose.msra.mxu0 0
        %1354 = vmatprep.subr.bf16.mxu0 0
        %1355 = vmatpush1.bf16.xpose.msra.mxu0 0
        %1356 = vmatprep.subr.bf16.mxu0 0
        %1357 = vmatpush1.bf16.xpose.msra.mxu0 0
        %1358 = vmatprep.subr.bf16.mxu0 0
        %1359 = vmatpush1.bf16.xpose.msra.mxu0 0
        %1360 = vmatprep.subr.bf16.mxu0 0
        %1361 = vmatpush1.bf16.xpose.msra.mxu0 0
        %1362 = vmatprep.subr.bf16.mxu0 0
        %1363 = vmatpush1.bf16.xpose.msra.mxu0 0
        %1364 = vmatprep.subr.bf16.mxu0 0
        %1365 = vmatpush1.bf16.xpose.msra.mxu0 0
        %1366 = vmatprep.mubr.bf16.mxu0 0
        %1367 = vmatmul.mubr.bf16.gmra.mrb[0].mxu0 %v1329
        %v1368 = vpop.f32.mrb[0].mxu0
        %v1369 = vadd.f32 0.0, %v1368
        %v1370 = vpop.f32.mrb[0].mxu0
        %v1371 = vpop.f32.mrb[0].mxu0
        %v1372 = vpop.f32.mrb[0].mxu0
        %1373 = vdwg.mxu0
        %v1375 = vsel %vm1281, %v1275, 0
        %v1378 = vsel %vm1281, %v1279, 0
        %1380 = vmatprep.subr.bf16.mxu0 0
        %1381 = vmatpush1.bf16.xpose.msra.mxu0 %v1378
        %1382 = vmatprep.subr.bf16.mxu0 0
        %1383 = vmatpush1.bf16.xpose.msra.mxu0 0
        %1384 = vmatprep.subr.bf16.mxu0 0
        %1385 = vmatpush1.bf16.xpose.msra.mxu0 0
        %1386 = vmatprep.subr.bf16.mxu0 0
        %1387 = vmatpush1.bf16.xpose.msra.mxu0 0
        %1388 = vmatprep.subr.bf16.mxu0 0
        %1389 = vmatpush1.bf16.xpose.msra.mxu0 0
        %1390 = vmatprep.subr.bf16.mxu0 0
        %1391 = vmatpush1.bf16.xpose.msra.mxu0 0
        %1392 = vmatprep.subr.bf16.mxu0 0
        %1393 = vmatpush1.bf16.xpose.msra.mxu0 0
        %1394 = vmatprep.subr.bf16.mxu0 0
        %1395 = vmatpush1.bf16.xpose.msra.mxu0 0
        %1396 = vmatprep.subr.bf16.mxu0 0
        %1397 = vmatpush1.bf16.xpose.msra.mxu0 0
        %1398 = vmatprep.subr.bf16.mxu0 0
        %1399 = vmatpush1.bf16.xpose.msra.mxu0 0
        %1400 = vmatprep.subr.bf16.mxu0 0
        %1401 = vmatpush1.bf16.xpose.msra.mxu0 0
        %1402 = vmatprep.subr.bf16.mxu0 0
        %1403 = vmatpush1.bf16.xpose.msra.mxu0 0
        %1404 = vmatprep.subr.bf16.mxu0 0
        %1405 = vmatpush1.bf16.xpose.msra.mxu0 0
        %1406 = vmatprep.subr.bf16.mxu0 0
        %1407 = vmatpush1.bf16.xpose.msra.mxu0 0
        %1408 = vmatprep.subr.bf16.mxu0 0
        %1409 = vmatpush1.bf16.xpose.msra.mxu0 0
        %1410 = vmatprep.subr.bf16.mxu0 0
        %1411 = vmatpush1.bf16.xpose.msra.mxu0 0
        %1412 = vmatprep.mubr.bf16.mxu0 0
        %1413 = vmatmul.mubr.bf16.gmra.mrb[0].mxu0 %v1375
        %v1414 = vpop.f32.mrb[0].mxu0
        %v1415 = vadd.f32 0.0, %v1414
        %v1416 = vpop.f32.mrb[0].mxu0
        %v1417 = vpop.f32.mrb[0].mxu0
        %v1418 = vpop.f32.mrb[0].mxu0
        %1419 = vdwg.mxu0
        %v1421 = vsel %vm1281, %v1276, 0
        %v1424 = vsel %vm1281, %v1280, 0
        %1426 = vmatprep.subr.bf16.mxu0 0
        %1427 = vmatpush1.bf16.xpose.msra.mxu0 %v1424
        %1428 = vmatprep.subr.bf16.mxu0 0
        %1429 = vmatpush1.bf16.xpose.msra.mxu0 0
        %1430 = vmatprep.subr.bf16.mxu0 0
        %1431 = vmatpush1.bf16.xpose.msra.mxu0 0
        %1432 = vmatprep.subr.bf16.mxu0 0
        %1433 = vmatpush1.bf16.xpose.msra.mxu0 0
        %1434 = vmatprep.subr.bf16.mxu0 0
        %1435 = vmatpush1.bf16.xpose.msra.mxu0 0
        %1436 = vmatprep.subr.bf16.mxu0 0
        %1437 = vmatpush1.bf16.xpose.msra.mxu0 0
        %1438 = vmatprep.subr.bf16.mxu0 0
        %1439 = vmatpush1.bf16.xpose.msra.mxu0 0
        %1440 = vmatprep.subr.bf16.mxu0 0
        %1441 = vmatpush1.bf16.xpose.msra.mxu0 0
        %1442 = vmatprep.subr.bf16.mxu0 0
        %1443 = vmatpush1.bf16.xpose.msra.mxu0 0
        %1444 = vmatprep.subr.bf16.mxu0 0
        %1445 = vmatpush1.bf16.xpose.msra.mxu0 0
        %1446 = vmatprep.subr.bf16.mxu0 0
        %1447 = vmatpush1.bf16.xpose.msra.mxu0 0
        %1448 = vmatprep.subr.bf16.mxu0 0
        %1449 = vmatpush1.bf16.xpose.msra.mxu0 0
        %1450 = vmatprep.subr.bf16.mxu0 0
        %1451 = vmatpush1.bf16.xpose.msra.mxu0 0
        %1452 = vmatprep.subr.bf16.mxu0 0
        %1453 = vmatpush1.bf16.xpose.msra.mxu0 0
        %1454 = vmatprep.subr.bf16.mxu0 0
        %1455 = vmatpush1.bf16.xpose.msra.mxu0 0
        %1456 = vmatprep.subr.bf16.mxu0 0
        %1457 = vmatpush1.bf16.xpose.msra.mxu0 0
        %1458 = vmatprep.mubr.bf16.mxu0 0
        %1459 = vmatmul.mubr.bf16.gmra.mrb[0].mxu0 %v1421
        %v1460 = vpop.f32.mrb[0].mxu0
        %v1461 = vadd.f32 0.0, %v1460
        %v1462 = vpop.f32.mrb[0].mxu0
        %v1463 = vpop.f32.mrb[0].mxu0
        %v1464 = vpop.f32.mrb[0].mxu0
        %1465 = vdwg.mxu0
        %v1466 = vmul.f32 %v1323, 0.25
        %v1467 = vmul.f32 %v1369, 0.25
        %v1468 = vmul.f32 %v1415, 0.25
        %v1469 = vmul.f32 %v1461, 0.25
        %v1470 = vadd.f32 %v1466, %v496
        %v1471 = vadd.f32 %v1467, %v497
        %v1472 = vadd.f32 %v1468, %v498
        %v1473 = vadd.f32 %v1469, %v499
        %vm1474 = vcmask 64512
        %v1475 = vsel %vm1474, %v1470, -inf
        %1476 = vmax.xlane.f32.xlu0 %v1475
        %v1477 = vpop.xlane.xlu0 %1476
        %v1478 = vsel %vm1474, %v1471, -inf
        %1479 = vmax.xlane.f32.xlu0 %v1478
        %v1480 = vpop.xlane.xlu0 %1479
        %v1481 = vsel %vm1474, %v1472, -inf
        %1482 = vmax.xlane.f32.xlu0 %v1481
        %v1483 = vpop.xlane.xlu0 %1482
        %v1484 = vsel %vm1474, %v1473, -inf
        %1485 = vmax.xlane.f32.xlu0 %v1484
        %v1486 = vpop.xlane.xlu0 %1485
        %v1487 = vsub.f32 %v1470, %v1477
        %v1488 = vsub.f32 %v1471, %v1480
        %v1489 = vsub.f32 %v1472, %v1483
        %v1490 = vsub.f32 %v1473, %v1486
        %v1491 = vmul.f32 %v1487, 1.442695
        %v1492 = vpow.pop %v1491
        %v1493 = vmul.f32 %v1488, 1.442695
        %v1494 = vpow.pop %v1493
        %v1495 = vmul.f32 %v1489, 1.442695
        %v1496 = vpow.pop %v1495
        %v1497 = vmul.f32 %v1490, 1.442695
        %v1498 = vpow.pop %v1497
        %v1499 = vsel %vm1474, %v1492, 0.0
        %1500 = vadd.xlane.f32.xlu0 %v1499
        %v1501 = vpop.xlane.xlu0 %1500
        %v1502 = vsel %vm1474, %v1494, 0.0
        %1503 = vadd.xlane.f32.xlu0 %v1502
        %v1504 = vpop.xlane.xlu0 %1503
        %v1505 = vsel %vm1474, %v1496, 0.0
        %1506 = vadd.xlane.f32.xlu0 %v1505
        %v1507 = vpop.xlane.xlu0 %1506
        %v1508 = vsel %vm1474, %v1498, 0.0
        %1509 = vadd.xlane.f32.xlu0 %v1508
        %v1510 = vpop.xlane.xlu0 %1509
        %v1511 = vrcp.pop %v1501
        %v1512 = vrcp.pop %v1504
        %v1513 = vrcp.pop %v1507
        %v1514 = vrcp.pop %v1510
        %v1515 = vmul.f32 %v1492, %v1511
        %v1516 = vmul.f32 %v1494, %v1512
        %v1517 = vmul.f32 %v1496, %v1513
        %v1518 = vmul.f32 %v1498, %v1514
        %v1519 = vpack.c.bf16 %v1515, %v1515
        %v1520 = vpack.c.bf16 %v1516, %v1516
        %v1521 = vpack.c.bf16 %v1517, %v1517
        %v1522 = vpack.c.bf16 %v1518, %v1518
        %v1523 = vpack.c.bf16 %v1076, %v1076
        %v1524 = vpack.c.bf16 %v1140, %v1140
        %v1525 = vpack.c.bf16 %v1204, %v1204
        %v1526 = vpack.c.bf16 %v1268, %v1268
        %v1528 = vsel %vm1474, %v1519, 0
        %vm1530 = vcmask 1043456
        %v1532 = vsel %vm1530, %v1523, 0
        %1534 = vmatprep.subr.bf16.mxu0 0
        %1535 = vmatpush1.bf16.msra.mxu0 %v1532
        %1536 = vmatprep.subr.bf16.mxu0 0
        %1537 = vmatpush1.bf16.msra.mxu0 0
        %1538 = vmatprep.subr.bf16.mxu0 0
        %1539 = vmatpush1.bf16.msra.mxu0 0
        %1540 = vmatprep.subr.bf16.mxu0 0
        %1541 = vmatpush1.bf16.msra.mxu0 0
        %1542 = vmatprep.subr.bf16.mxu0 0
        %1543 = vmatpush1.bf16.msra.mxu0 0
        %1544 = vmatprep.subr.bf16.mxu0 0
        %1545 = vmatpush1.bf16.msra.mxu0 0
        %1546 = vmatprep.subr.bf16.mxu0 0
        %1547 = vmatpush1.bf16.msra.mxu0 0
        %1548 = vmatprep.subr.bf16.mxu0 0
        %1549 = vmatpush1.bf16.msra.mxu0 0
        %1550 = vmatprep.subr.bf16.mxu0 0
        %1551 = vmatpush1.bf16.msra.mxu0 0
        %1552 = vmatprep.subr.bf16.mxu0 0
        %1553 = vmatpush1.bf16.msra.mxu0 0
        %1554 = vmatprep.subr.bf16.mxu0 0
        %1555 = vmatpush1.bf16.msra.mxu0 0
        %1556 = vmatprep.subr.bf16.mxu0 0
        %1557 = vmatpush1.bf16.msra.mxu0 0
        %1558 = vmatprep.subr.bf16.mxu0 0
        %1559 = vmatpush1.bf16.msra.mxu0 0
        %1560 = vmatprep.subr.bf16.mxu0 0
        %1561 = vmatpush1.bf16.msra.mxu0 0
        %1562 = vmatprep.subr.bf16.mxu0 0
        %1563 = vmatpush1.bf16.msra.mxu0 0
        %1564 = vmatprep.subr.bf16.mxu0 0
        %1565 = vmatpush1.bf16.msra.mxu0 0
        %1566 = vmatprep.mubr.bf16.mxu0 0
        %1567 = vmatmul.mubr.bf16.gmra.mrb[0].mxu0 %v1528
        %v1568 = vpop.f32.mrb[0].mxu0
        %v1569 = vadd.f32 0.0, %v1568
        %v1570 = vpop.f32.mrb[0].mxu0
        %v1571 = vpop.f32.mrb[0].mxu0
        %v1572 = vpop.f32.mrb[0].mxu0
        %1573 = vdwg.mxu0
        %v1575 = vsel %vm1474, %v1520, 0
        %v1578 = vsel %vm1530, %v1524, 0
        %1580 = vmatprep.subr.bf16.mxu0 0
        %1581 = vmatpush1.bf16.msra.mxu0 %v1578
        %1582 = vmatprep.subr.bf16.mxu0 0
        %1583 = vmatpush1.bf16.msra.mxu0 0
        %1584 = vmatprep.subr.bf16.mxu0 0
        %1585 = vmatpush1.bf16.msra.mxu0 0
        %1586 = vmatprep.subr.bf16.mxu0 0
        %1587 = vmatpush1.bf16.msra.mxu0 0
        %1588 = vmatprep.subr.bf16.mxu0 0
        %1589 = vmatpush1.bf16.msra.mxu0 0
        %1590 = vmatprep.subr.bf16.mxu0 0
        %1591 = vmatpush1.bf16.msra.mxu0 0
        %1592 = vmatprep.subr.bf16.mxu0 0
        %1593 = vmatpush1.bf16.msra.mxu0 0
        %1594 = vmatprep.subr.bf16.mxu0 0
        %1595 = vmatpush1.bf16.msra.mxu0 0
        %1596 = vmatprep.subr.bf16.mxu0 0
        %1597 = vmatpush1.bf16.msra.mxu0 0
        %1598 = vmatprep.subr.bf16.mxu0 0
        %1599 = vmatpush1.bf16.msra.mxu0 0
        %1600 = vmatprep.subr.bf16.mxu0 0
        %1601 = vmatpush1.bf16.msra.mxu0 0
        %1602 = vmatprep.subr.bf16.mxu0 0
        %1603 = vmatpush1.bf16.msra.mxu0 0
        %1604 = vmatprep.subr.bf16.mxu0 0
        %1605 = vmatpush1.bf16.msra.mxu0 0
        %1606 = vmatprep.subr.bf16.mxu0 0
        %1607 = vmatpush1.bf16.msra.mxu0 0
        %1608 = vmatprep.subr.bf16.mxu0 0
        %1609 = vmatpush1.bf16.msra.mxu0 0
        %1610 = vmatprep.subr.bf16.mxu0 0
        %1611 = vmatpush1.bf16.msra.mxu0 0
        %1612 = vmatprep.mubr.bf16.mxu0 0
        %1613 = vmatmul.mubr.bf16.gmra.mrb[0].mxu0 %v1575
        %v1614 = vpop.f32.mrb[0].mxu0
        %v1615 = vadd.f32 0.0, %v1614
        %v1616 = vpop.f32.mrb[0].mxu0
        %v1617 = vpop.f32.mrb[0].mxu0
        %v1618 = vpop.f32.mrb[0].mxu0
        %1619 = vdwg.mxu0
        %v1621 = vsel %vm1474, %v1521, 0
        %v1624 = vsel %vm1530, %v1525, 0
        %1626 = vmatprep.subr.bf16.mxu0 0
        %1627 = vmatpush1.bf16.msra.mxu0 %v1624
        %1628 = vmatprep.subr.bf16.mxu0 0
        %1629 = vmatpush1.bf16.msra.mxu0 0
        %1630 = vmatprep.subr.bf16.mxu0 0
        %1631 = vmatpush1.bf16.msra.mxu0 0
        %1632 = vmatprep.subr.bf16.mxu0 0
        %1633 = vmatpush1.bf16.msra.mxu0 0
        %1634 = vmatprep.subr.bf16.mxu0 0
        %1635 = vmatpush1.bf16.msra.mxu0 0
        %1636 = vmatprep.subr.bf16.mxu0 0
        %1637 = vmatpush1.bf16.msra.mxu0 0
        %1638 = vmatprep.subr.bf16.mxu0 0
        %1639 = vmatpush1.bf16.msra.mxu0 0
        %1640 = vmatprep.subr.bf16.mxu0 0
        %1641 = vmatpush1.bf16.msra.mxu0 0
        %1642 = vmatprep.subr.bf16.mxu0 0
        %1643 = vmatpush1.bf16.msra.mxu0 0
        %1644 = vmatprep.subr.bf16.mxu0 0
        %1645 = vmatpush1.bf16.msra.mxu0 0
        %1646 = vmatprep.subr.bf16.mxu0 0
        %1647 = vmatpush1.bf16.msra.mxu0 0
        %1648 = vmatprep.subr.bf16.mxu0 0
        %1649 = vmatpush1.bf16.msra.mxu0 0
        %1650 = vmatprep.subr.bf16.mxu0 0
        %1651 = vmatpush1.bf16.msra.mxu0 0
        %1652 = vmatprep.subr.bf16.mxu0 0
        %1653 = vmatpush1.bf16.msra.mxu0 0
        %1654 = vmatprep.subr.bf16.mxu0 0
        %1655 = vmatpush1.bf16.msra.mxu0 0
        %1656 = vmatprep.subr.bf16.mxu0 0
        %1657 = vmatpush1.bf16.msra.mxu0 0
        %1658 = vmatprep.mubr.bf16.mxu0 0
        %1659 = vmatmul.mubr.bf16.gmra.mrb[0].mxu0 %v1621
        %v1660 = vpop.f32.mrb[0].mxu0
        %v1661 = vadd.f32 0.0, %v1660
        %v1662 = vpop.f32.mrb[0].mxu0
        %v1663 = vpop.f32.mrb[0].mxu0
        %v1664 = vpop.f32.mrb[0].mxu0
        %1665 = vdwg.mxu0
        %v1667 = vsel %vm1474, %v1522, 0
        %v1670 = vsel %vm1530, %v1526, 0
        %1672 = vmatprep.subr.bf16.mxu0 0
        %1673 = vmatpush1.bf16.msra.mxu0 %v1670
        %1674 = vmatprep.subr.bf16.mxu0 0
        %1675 = vmatpush1.bf16.msra.mxu0 0
        %1676 = vmatprep.subr.bf16.mxu0 0
        %1677 = vmatpush1.bf16.msra.mxu0 0
        %1678 = vmatprep.subr.bf16.mxu0 0
        %1679 = vmatpush1.bf16.msra.mxu0 0
        %1680 = vmatprep.subr.bf16.mxu0 0
        %1681 = vmatpush1.bf16.msra.mxu0 0
        %1682 = vmatprep.subr.bf16.mxu0 0
        %1683 = vmatpush1.bf16.msra.mxu0 0
        %1684 = vmatprep.subr.bf16.mxu0 0
        %1685 = vmatpush1.bf16.msra.mxu0 0
        %1686 = vmatprep.subr.bf16.mxu0 0
        %1687 = vmatpush1.bf16.msra.mxu0 0
        %1688 = vmatprep.subr.bf16.mxu0 0
        %1689 = vmatpush1.bf16.msra.mxu0 0
        %1690 = vmatprep.subr.bf16.mxu0 0
        %1691 = vmatpush1.bf16.msra.mxu0 0
        %1692 = vmatprep.subr.bf16.mxu0 0
        %1693 = vmatpush1.bf16.msra.mxu0 0
        %1694 = vmatprep.subr.bf16.mxu0 0
        %1695 = vmatpush1.bf16.msra.mxu0 0
        %1696 = vmatprep.subr.bf16.mxu0 0
        %1697 = vmatpush1.bf16.msra.mxu0 0
        %1698 = vmatprep.subr.bf16.mxu0 0
        %1699 = vmatpush1.bf16.msra.mxu0 0
        %1700 = vmatprep.subr.bf16.mxu0 0
        %1701 = vmatpush1.bf16.msra.mxu0 0
        %1702 = vmatprep.subr.bf16.mxu0 0
        %1703 = vmatpush1.bf16.msra.mxu0 0
        %1704 = vmatprep.mubr.bf16.mxu0 0
        %1705 = vmatmul.mubr.bf16.gmra.mrb[0].mxu0 %v1667
        %v1706 = vpop.f32.mrb[0].mxu0
        %v1707 = vadd.f32 0.0, %v1706
        %v1708 = vpop.f32.mrb[0].mxu0
        %v1709 = vpop.f32.mrb[0].mxu0
        %v1710 = vpop.f32.mrb[0].mxu0
        %1711 = vdwg.mxu0
        %v1712 = vpack.c.bf16 %v1569, %v1569
        %v1713 = vpack.c.bf16 %v1615, %v1615
        %v1714 = vpack.c.bf16 %v1661, %v1661
        %v1715 = vpack.c.bf16 %v1707, %v1707
        %v1718 = vunpack.c.l.b16 %v488
        %v1719 = vunpack.c.l.b16 %v489
        %v1720 = vpack.c.b16 %v1719, %v1718
        %v1723 = vsel %vm1281, %v1712, 0
        %1725 = vmatprep.subr.bf16.mxu0 0
        %1726 = vmatpush1.bf16.msra.mxu0 %v1720
        %1727 = vmatprep.subr.bf16.mxu0 0
        %1728 = vmatpush1.bf16.msra.mxu0 0
        %1729 = vmatprep.subr.bf16.mxu0 0
        %1730 = vmatpush1.bf16.msra.mxu0 0
        %1731 = vmatprep.subr.bf16.mxu0 0
        %1732 = vmatpush1.bf16.msra.mxu0 0
        %1733 = vmatprep.subr.bf16.mxu0 0
        %1734 = vmatpush1.bf16.msra.mxu0 0
        %1735 = vmatprep.subr.bf16.mxu0 0
        %1736 = vmatpush1.bf16.msra.mxu0 0
        %1737 = vmatprep.subr.bf16.mxu0 0
        %1738 = vmatpush1.bf16.msra.mxu0 0
        %1739 = vmatprep.subr.bf16.mxu0 0
        %1740 = vmatpush1.bf16.msra.mxu0 0
        %1741 = vmatprep.subr.bf16.mxu0 0
        %1742 = vmatpush1.bf16.msra.mxu0 0
        %1743 = vmatprep.subr.bf16.mxu0 0
        %1744 = vmatpush1.bf16.msra.mxu0 0
        %1745 = vmatprep.subr.bf16.mxu0 0
        %1746 = vmatpush1.bf16.msra.mxu0 0
        %1747 = vmatprep.subr.bf16.mxu0 0
        %1748 = vmatpush1.bf16.msra.mxu0 0
        %1749 = vmatprep.subr.bf16.mxu0 0
        %1750 = vmatpush1.bf16.msra.mxu0 0
        %1751 = vmatprep.subr.bf16.mxu0 0
        %1752 = vmatpush1.bf16.msra.mxu0 0
        %1753 = vmatprep.subr.bf16.mxu0 0
        %1754 = vmatpush1.bf16.msra.mxu0 0
        %1755 = vmatprep.subr.bf16.mxu0 0
        %1756 = vmatpush1.bf16.msra.mxu0 0
        %1757 = vmatprep.mubr.bf16.mxu0 0
        %1758 = vmatmul.mubr.bf16.gmra.mrb[0].mxu0 %v1723
        %v1759 = vpop.f32.mrb[0].mxu0
        %v1760 = vadd.f32 0.0, %v1759
        %v1761 = vpop.f32.mrb[0].mxu0
        %v1762 = vpop.f32.mrb[0].mxu0
        %v1763 = vpop.f32.mrb[0].mxu0
        %1764 = vdwg.mxu0
        %v1767 = vunpack.c.l.b16 %v490
        %v1768 = vunpack.c.l.b16 %v491
        %v1769 = vpack.c.b16 %v1768, %v1767
        %v1772 = vsel %vm1281, %v1713, 0
        %1774 = vmatprep.subr.bf16.mxu0 0
        %1775 = vmatpush1.bf16.msra.mxu0 %v1769
        %1776 = vmatprep.subr.bf16.mxu0 0
        %1777 = vmatpush1.bf16.msra.mxu0 0
        %1778 = vmatprep.subr.bf16.mxu0 0
        %1779 = vmatpush1.bf16.msra.mxu0 0
        %1780 = vmatprep.subr.bf16.mxu0 0
        %1781 = vmatpush1.bf16.msra.mxu0 0
        %1782 = vmatprep.subr.bf16.mxu0 0
        %1783 = vmatpush1.bf16.msra.mxu0 0
        %1784 = vmatprep.subr.bf16.mxu0 0
        %1785 = vmatpush1.bf16.msra.mxu0 0
        %1786 = vmatprep.subr.bf16.mxu0 0
        %1787 = vmatpush1.bf16.msra.mxu0 0
        %1788 = vmatprep.subr.bf16.mxu0 0
        %1789 = vmatpush1.bf16.msra.mxu0 0
        %1790 = vmatprep.subr.bf16.mxu0 0
        %1791 = vmatpush1.bf16.msra.mxu0 0
        %1792 = vmatprep.subr.bf16.mxu0 0
        %1793 = vmatpush1.bf16.msra.mxu0 0
        %1794 = vmatprep.subr.bf16.mxu0 0
        %1795 = vmatpush1.bf16.msra.mxu0 0
        %1796 = vmatprep.subr.bf16.mxu0 0
        %1797 = vmatpush1.bf16.msra.mxu0 0
        %1798 = vmatprep.subr.bf16.mxu0 0
        %1799 = vmatpush1.bf16.msra.mxu0 0
        %1800 = vmatprep.subr.bf16.mxu0 0
        %1801 = vmatpush1.bf16.msra.mxu0 0
        %1802 = vmatprep.subr.bf16.mxu0 0
        %1803 = vmatpush1.bf16.msra.mxu0 0
        %1804 = vmatprep.subr.bf16.mxu0 0
        %1805 = vmatpush1.bf16.msra.mxu0 0
        %1806 = vmatprep.mubr.bf16.mxu0 0
        %1807 = vmatmul.mubr.bf16.gmra.mrb[0].mxu0 %v1772
        %v1808 = vpop.f32.mrb[0].mxu0
        %v1809 = vadd.f32 0.0, %v1808
        %v1810 = vpop.f32.mrb[0].mxu0
        %v1811 = vpop.f32.mrb[0].mxu0
        %v1812 = vpop.f32.mrb[0].mxu0
        %1813 = vdwg.mxu0
        %v1816 = vunpack.c.l.b16 %v492
        %v1817 = vunpack.c.l.b16 %v493
        %v1818 = vpack.c.b16 %v1817, %v1816
        %v1821 = vsel %vm1281, %v1714, 0
        %1823 = vmatprep.subr.bf16.mxu0 0
        %1824 = vmatpush1.bf16.msra.mxu0 %v1818
        %1825 = vmatprep.subr.bf16.mxu0 0
        %1826 = vmatpush1.bf16.msra.mxu0 0
        %1827 = vmatprep.subr.bf16.mxu0 0
        %1828 = vmatpush1.bf16.msra.mxu0 0
        %1829 = vmatprep.subr.bf16.mxu0 0
        %1830 = vmatpush1.bf16.msra.mxu0 0
        %1831 = vmatprep.subr.bf16.mxu0 0
        %1832 = vmatpush1.bf16.msra.mxu0 0
        %1833 = vmatprep.subr.bf16.mxu0 0
        %1834 = vmatpush1.bf16.msra.mxu0 0
        %1835 = vmatprep.subr.bf16.mxu0 0
        %1836 = vmatpush1.bf16.msra.mxu0 0
        %1837 = vmatprep.subr.bf16.mxu0 0
        %1838 = vmatpush1.bf16.msra.mxu0 0
        %1839 = vmatprep.subr.bf16.mxu0 0
        %1840 = vmatpush1.bf16.msra.mxu0 0
        %1841 = vmatprep.subr.bf16.mxu0 0
        %1842 = vmatpush1.bf16.msra.mxu0 0
        %1843 = vmatprep.subr.bf16.mxu0 0
        %1844 = vmatpush1.bf16.msra.mxu0 0
        %1845 = vmatprep.subr.bf16.mxu0 0
        %1846 = vmatpush1.bf16.msra.mxu0 0
        %1847 = vmatprep.subr.bf16.mxu0 0
        %1848 = vmatpush1.bf16.msra.mxu0 0
        %1849 = vmatprep.subr.bf16.mxu0 0
        %1850 = vmatpush1.bf16.msra.mxu0 0
        %1851 = vmatprep.subr.bf16.mxu0 0
        %1852 = vmatpush1.bf16.msra.mxu0 0
        %1853 = vmatprep.subr.bf16.mxu0 0
        %1854 = vmatpush1.bf16.msra.mxu0 0
        %1855 = vmatprep.mubr.bf16.mxu0 0
        %1856 = vmatmul.mubr.bf16.gmra.mrb[0].mxu0 %v1821
        %v1857 = vpop.f32.mrb[0].mxu0
        %v1858 = vadd.f32 0.0, %v1857
        %v1859 = vpop.f32.mrb[0].mxu0
        %v1860 = vpop.f32.mrb[0].mxu0
        %v1861 = vpop.f32.mrb[0].mxu0
        %1862 = vdwg.mxu0
        %v1865 = vunpack.c.l.b16 %v494
        %v1866 = vunpack.c.l.b16 %v495
        %v1867 = vpack.c.b16 %v1866, %v1865
        %v1870 = vsel %vm1281, %v1715, 0
        %1872 = vmatprep.subr.bf16.mxu0 0
        %1873 = vmatpush1.bf16.msra.mxu0 %v1867
        %1874 = vmatprep.subr.bf16.mxu0 0
        %1875 = vmatpush1.bf16.msra.mxu0 0
        %1876 = vmatprep.subr.bf16.mxu0 0
        %1877 = vmatpush1.bf16.msra.mxu0 0
        %1878 = vmatprep.subr.bf16.mxu0 0
        %1879 = vmatpush1.bf16.msra.mxu0 0
        %1880 = vmatprep.subr.bf16.mxu0 0
        %1881 = vmatpush1.bf16.msra.mxu0 0
        %1882 = vmatprep.subr.bf16.mxu0 0
        %1883 = vmatpush1.bf16.msra.mxu0 0
        %1884 = vmatprep.subr.bf16.mxu0 0
        %1885 = vmatpush1.bf16.msra.mxu0 0
        %1886 = vmatprep.subr.bf16.mxu0 0
        %1887 = vmatpush1.bf16.msra.mxu0 0
        %1888 = vmatprep.subr.bf16.mxu0 0
        %1889 = vmatpush1.bf16.msra.mxu0 0
        %1890 = vmatprep.subr.bf16.mxu0 0
        %1891 = vmatpush1.bf16.msra.mxu0 0
        %1892 = vmatprep.subr.bf16.mxu0 0
        %1893 = vmatpush1.bf16.msra.mxu0 0
        %1894 = vmatprep.subr.bf16.mxu0 0
        %1895 = vmatpush1.bf16.msra.mxu0 0
        %1896 = vmatprep.subr.bf16.mxu0 0
        %1897 = vmatpush1.bf16.msra.mxu0 0
        %1898 = vmatprep.subr.bf16.mxu0 0
        %1899 = vmatpush1.bf16.msra.mxu0 0
        %1900 = vmatprep.subr.bf16.mxu0 0
        %1901 = vmatpush1.bf16.msra.mxu0 0
        %1902 = vmatprep.subr.bf16.mxu0 0
        %1903 = vmatpush1.bf16.msra.mxu0 0
        %1904 = vmatprep.mubr.bf16.mxu0 0
        %1905 = vmatmul.mubr.bf16.gmra.mrb[0].mxu0 %v1870
        %v1906 = vpop.f32.mrb[0].mxu0
        %v1907 = vadd.f32 0.0, %v1906
        %v1908 = vpop.f32.mrb[0].mxu0
        %v1909 = vpop.f32.mrb[0].mxu0
        %v1910 = vpop.f32.mrb[0].mxu0
        %1911 = vdwg.mxu0
        %v1912 = vsel %vm525, %v1760, 0.0
        %v1913 = vsel %vm525, %v1809, 0.0
        %v1914 = vadd.f32 %v1912, %v1913
        %v1915 = vsel %vm525, %v1858, 0.0
        %v1916 = vadd.f32 %v1914, %v1915
        %v1917 = vsel %vm525, %v1907, 0.0
        %v1918 = vadd.f32 %v1916, %v1917
        %v1919 = vadd.f32 %v1918, %v381
        %v1920 = vsel %vm525, %v1919, 0.0
        %1921 = vadd.xlane.f32.xlu0 %v1920
        %v1922 = vpop.xlane.xlu0 %1921
        %v1923 = vrcp.pop 64.0
        %v1924 = vmul.f32 %v1922, %v1923
        %v1925 = vsub.f32 %v1919, %v1924
        %v1926 = vmul.f32 %v1925, %v1925
        %v1927 = vsel %vm525, %v1926, 0.0
        %1928 = vadd.xlane.f32.xlu0 %v1927
        %v1929 = vpop.xlane.xlu0 %1928
        %v1930 = vmul.f32 %v1929, %v1923
        %v1931 = vadd.f32 %v1930, 1e-05
        %v1932 = vrsqrt.pop %v1931
        %v1933 = vmul.f32 %v1925, %v1932
        %1934 = vst.msk [vmem:[%s363] sm:$0xff] %vm1474, %v1515
        %1935 = vst.msk [vmem:[%s363 + $0x8] sm:$0xff] %vm1474, %v1516
        %1936 = vst.msk [vmem:[%s363 + $0x10] sm:$0xff] %vm1474, %v1517
        %1937 = vst.msk [vmem:[%s363 + $0x18] sm:$0xff] %vm1474, %v1518
        %s1938 = smul.addr %s382, 4
        %s1939 = scalar_lea.vmem %s6, %s1938
        %v1940 = vld [vmem:[%s1939] sm:$0xff]
        %v1941 = vld [vmem:[%s1939 + $0x8] sm:$0xff]
        %v1942 = vld [vmem:[%s1939 + $0x10] sm:$0xff]
        %v1943 = vld [vmem:[%s1939 + $0x18] sm:$0xff]
        %v1944 = vld [vmem:[%s1939 + $0x20] sm:$0xff]
        %v1945 = vld [vmem:[%s1939 + $0x28] sm:$0xff]
        %v1946 = vld [vmem:[%s1939 + $0x30] sm:$0xff]
        %v1947 = vld [vmem:[%s1939 + $0x38] sm:$0xff]
        %v1948 = vld [vmem:[%s1939 + $0x40] sm:$0xff]
        %v1949 = vld [vmem:[%s1939 + $0x48] sm:$0xff]
        %v1950 = vld [vmem:[%s1939 + $0x50] sm:$0xff]
        %v1951 = vld [vmem:[%s1939 + $0x58] sm:$0xff]
        %v1952 = vld [vmem:[%s1939 + $0x60] sm:$0xff]
        %v1953 = vld [vmem:[%s1939 + $0x68] sm:$0xff]
        %v1954 = vld [vmem:[%s1939 + $0x70] sm:$0xff]
        %v1955 = vld [vmem:[%s1939 + $0x78] sm:$0xff]
        %s1956 = smul.u32 %s32, 64
        %s1957 = smul.addr %s1956, 4
        %s1958 = scalar_lea.vmem %s7, %s1957
        %v1959 = vld [vmem:[%s1958] sm:$0xf]
        %v1960 = vld [vmem:[%s1958 + $0x4] sm:$0xf]
        %v1961 = vld [vmem:[%s1958 + $0x8] sm:$0xf]
        %v1962 = vld [vmem:[%s1958 + $0xc] sm:$0xf]
        %v1963 = vld [vmem:[%s1958 + $0x10] sm:$0xf]
        %v1964 = vld [vmem:[%s1958 + $0x14] sm:$0xf]
        %v1965 = vld [vmem:[%s1958 + $0x18] sm:$0xf]
        %v1966 = vld [vmem:[%s1958 + $0x1c] sm:$0xf]
        %v1967 = vld [vmem:[%s1958 + $0x20] sm:$0xf]
        %v1968 = vld [vmem:[%s1958 + $0x24] sm:$0xf]
        %v1969 = vld [vmem:[%s1958 + $0x28] sm:$0xf]
        %v1970 = vld [vmem:[%s1958 + $0x2c] sm:$0xf]
        %v1971 = vld [vmem:[%s1958 + $0x30] sm:$0xf]
        %v1972 = vld [vmem:[%s1958 + $0x34] sm:$0xf]
        %v1973 = vld [vmem:[%s1958 + $0x38] sm:$0xf]
        %v1974 = vld [vmem:[%s1958 + $0x3c] sm:$0xf]
        %v1975 = vld [vmem:[%s1958 + $0x40] sm:$0xf]
        %v1976 = vld [vmem:[%s1958 + $0x44] sm:$0xf]
        %v1977 = vld [vmem:[%s1958 + $0x48] sm:$0xf]
        %v1978 = vld [vmem:[%s1958 + $0x4c] sm:$0xf]
        %v1979 = vld [vmem:[%s1958 + $0x50] sm:$0xf]
        %v1980 = vld [vmem:[%s1958 + $0x54] sm:$0xf]
        %v1981 = vld [vmem:[%s1958 + $0x58] sm:$0xf]
        %v1982 = vld [vmem:[%s1958 + $0x5c] sm:$0xf]
        %v1983 = vld [vmem:[%s1958 + $0x60] sm:$0xf]
        %v1984 = vld [vmem:[%s1958 + $0x64] sm:$0xf]
        %v1985 = vld [vmem:[%s1958 + $0x68] sm:$0xf]
        %v1986 = vld [vmem:[%s1958 + $0x6c] sm:$0xf]
        %v1987 = vld [vmem:[%s1958 + $0x70] sm:$0xf]
        %v1988 = vld [vmem:[%s1958 + $0x74] sm:$0xf]
        %v1989 = vld [vmem:[%s1958 + $0x78] sm:$0xf]
        %v1990 = vld [vmem:[%s1958 + $0x7c] sm:$0xf]
        %v1991 = vld [vmem:[%s1958 + $0x80] sm:$0xf]
        %v1992 = vld [vmem:[%s1958 + $0x84] sm:$0xf]
        %v1993 = vld [vmem:[%s1958 + $0x88] sm:$0xf]
        %v1994 = vld [vmem:[%s1958 + $0x8c] sm:$0xf]
        %v1995 = vld [vmem:[%s1958 + $0x90] sm:$0xf]
        %v1996 = vld [vmem:[%s1958 + $0x94] sm:$0xf]
        %v1997 = vld [vmem:[%s1958 + $0x98] sm:$0xf]
        %v1998 = vld [vmem:[%s1958 + $0x9c] sm:$0xf]
        %v1999 = vld [vmem:[%s1958 + $0xa0] sm:$0xf]
        %v2000 = vld [vmem:[%s1958 + $0xa4] sm:$0xf]
        %v2001 = vld [vmem:[%s1958 + $0xa8] sm:$0xf]
        %v2002 = vld [vmem:[%s1958 + $0xac] sm:$0xf]
        %v2003 = vld [vmem:[%s1958 + $0xb0] sm:$0xf]
        %v2004 = vld [vmem:[%s1958 + $0xb4] sm:$0xf]
        %v2005 = vld [vmem:[%s1958 + $0xb8] sm:$0xf]
        %v2006 = vld [vmem:[%s1958 + $0xbc] sm:$0xf]
        %v2007 = vld [vmem:[%s1958 + $0xc0] sm:$0xf]
        %v2008 = vld [vmem:[%s1958 + $0xc4] sm:$0xf]
        %v2009 = vld [vmem:[%s1958 + $0xc8] sm:$0xf]
        %v2010 = vld [vmem:[%s1958 + $0xcc] sm:$0xf]
        %v2011 = vld [vmem:[%s1958 + $0xd0] sm:$0xf]
        %v2012 = vld [vmem:[%s1958 + $0xd4] sm:$0xf]
        %v2013 = vld [vmem:[%s1958 + $0xd8] sm:$0xf]
        %v2014 = vld [vmem:[%s1958 + $0xdc] sm:$0xf]
        %v2015 = vld [vmem:[%s1958 + $0xe0] sm:$0xf]
        %v2016 = vld [vmem:[%s1958 + $0xe4] sm:$0xf]
        %v2017 = vld [vmem:[%s1958 + $0xe8] sm:$0xf]
        %v2018 = vld [vmem:[%s1958 + $0xec] sm:$0xf]
        %v2019 = vld [vmem:[%s1958 + $0xf0] sm:$0xf]
        %v2020 = vld [vmem:[%s1958 + $0xf4] sm:$0xf]
        %v2021 = vld [vmem:[%s1958 + $0xf8] sm:$0xf]
        %v2022 = vld [vmem:[%s1958 + $0xfc] sm:$0xf]
        %v2023 = vpack.c.bf16 %v1933, %v1933
        %v2040 = vunpack.c.l.b16 %v1940
        %v2041 = vunpack.c.h.b16 %v1940
        %v2042 = vunpack.c.l.b16 %v1941
        %v2043 = vunpack.c.h.b16 %v1941
        %v2044 = vunpack.c.l.b16 %v1942
        %v2045 = vunpack.c.h.b16 %v1942
        %v2046 = vunpack.c.l.b16 %v1943
        %v2047 = vunpack.c.h.b16 %v1943
        %v2048 = vunpack.c.l.b16 %v1944
        %v2049 = vunpack.c.h.b16 %v1944
        %v2050 = vunpack.c.l.b16 %v1945
        %v2051 = vunpack.c.h.b16 %v1945
        %v2052 = vunpack.c.l.b16 %v1946
        %v2053 = vunpack.c.h.b16 %v1946
        %v2054 = vunpack.c.l.b16 %v1947
        %v2055 = vunpack.c.h.b16 %v1947
        %v2056 = vunpack.c.l.b16 %v1948
        %v2057 = vunpack.c.h.b16 %v1948
        %v2058 = vunpack.c.l.b16 %v1949
        %v2059 = vunpack.c.h.b16 %v1949
        %v2060 = vunpack.c.l.b16 %v1950
        %v2061 = vunpack.c.h.b16 %v1950
        %v2062 = vunpack.c.l.b16 %v1951
        %v2063 = vunpack.c.h.b16 %v1951
        %v2064 = vunpack.c.l.b16 %v1952
        %v2065 = vunpack.c.h.b16 %v1952
        %v2066 = vunpack.c.l.b16 %v1953
        %v2067 = vunpack.c.h.b16 %v1953
        %v2068 = vunpack.c.l.b16 %v1954
        %v2069 = vunpack.c.h.b16 %v1954
        %v2070 = vunpack.c.l.b16 %v1955
        %v2071 = vunpack.c.h.b16 %v1955
        %v2072 = vpack.c.b16 %v2044, %v2040
        %v2073 = vpack.c.b16 %v2045, %v2041
        %v2074 = vpack.c.b16 %v2046, %v2042
        %v2075 = vpack.c.b16 %v2047, %v2043
        %v2076 = vpack.c.b16 %v2052, %v2048
        %v2077 = vpack.c.b16 %v2053, %v2049
        %v2078 = vpack.c.b16 %v2054, %v2050
        %v2079 = vpack.c.b16 %v2055, %v2051
        %v2080 = vpack.c.b16 %v2060, %v2056
        %v2081 = vpack.c.b16 %v2061, %v2057
        %v2082 = vpack.c.b16 %v2062, %v2058
        %v2083 = vpack.c.b16 %v2063, %v2059
        %v2084 = vpack.c.b16 %v2068, %v2064
        %v2085 = vpack.c.b16 %v2069, %v2065
        %v2086 = vpack.c.b16 %v2070, %v2066
        %v2087 = vpack.c.b16 %v2071, %v2067
        %v2105 = vsel %vm525, %v2023, 0
        %2107 = vmatprep.subr.bf16.mxu0 %v2073
        %2108 = vmatpush1.bf16.msra.mxu0 %v2072
        %2109 = vmatprep.subr.bf16.mxu0 %v2077
        %2110 = vmatpush1.bf16.msra.mxu0 %v2076
        %2111 = vmatprep.subr.bf16.mxu0 %v2081
        %2112 = vmatpush1.bf16.msra.mxu0 %v2080
        %2113 = vmatprep.subr.bf16.mxu0 %v2085
        %2114 = vmatpush1.bf16.msra.mxu0 %v2084
        %2115 = vmatprep.subr.bf16.mxu0 0
        %2116 = vmatpush1.bf16.msra.mxu0 0
        %2117 = vmatprep.subr.bf16.mxu0 0
        %2118 = vmatpush1.bf16.msra.mxu0 0
        %2119 = vmatprep.subr.bf16.mxu0 0
        %2120 = vmatpush1.bf16.msra.mxu0 0
        %2121 = vmatprep.subr.bf16.mxu0 0
        %2122 = vmatpush1.bf16.msra.mxu0 0
        %2123 = vmatprep.subr.bf16.mxu0 0
        %2124 = vmatpush1.bf16.msra.mxu0 0
        %2125 = vmatprep.subr.bf16.mxu0 0
        %2126 = vmatpush1.bf16.msra.mxu0 0
        %2127 = vmatprep.subr.bf16.mxu0 0
        %2128 = vmatpush1.bf16.msra.mxu0 0
        %2129 = vmatprep.subr.bf16.mxu0 0
        %2130 = vmatpush1.bf16.msra.mxu0 0
        %2131 = vmatprep.subr.bf16.mxu0 0
        %2132 = vmatpush1.bf16.msra.mxu0 0
        %2133 = vmatprep.subr.bf16.mxu0 0
        %2134 = vmatpush1.bf16.msra.mxu0 0
        %2135 = vmatprep.subr.bf16.mxu0 0
        %2136 = vmatpush1.bf16.msra.mxu0 0
        %2137 = vmatprep.subr.bf16.mxu0 0
        %2138 = vmatpush1.bf16.msra.mxu0 0
        %2139 = vmatprep.mubr.bf16.mxu0 0
        %2140 = vmatmul.mubr.bf16.gmra.mrb[0].mxu0 %v2105
        %v2141 = vpop.f32.mrb[0].mxu0
        %v2142 = vadd.f32 0.0, %v2141
        %v2143 = vpop.f32.mrb[0].mxu0
        %v2144 = vadd.f32 0.0, %v2143
        %v2145 = vpop.f32.mrb[0].mxu0
        %v2146 = vpop.f32.mrb[0].mxu0
        %2147 = vdwg.mxu0
        %2148 = vmatprep.subr.bf16.mxu0 %v2075
        %2149 = vmatpush1.bf16.msra.mxu0 %v2074
        %2150 = vmatprep.subr.bf16.mxu0 %v2079
        %2151 = vmatpush1.bf16.msra.mxu0 %v2078
        %2152 = vmatprep.subr.bf16.mxu0 %v2083
        %2153 = vmatpush1.bf16.msra.mxu0 %v2082
        %2154 = vmatprep.subr.bf16.mxu0 %v2087
        %2155 = vmatpush1.bf16.msra.mxu0 %v2086
        %2156 = vmatprep.subr.bf16.mxu0 0
        %2157 = vmatpush1.bf16.msra.mxu0 0
        %2158 = vmatprep.subr.bf16.mxu0 0
        %2159 = vmatpush1.bf16.msra.mxu0 0
        %2160 = vmatprep.subr.bf16.mxu0 0
        %2161 = vmatpush1.bf16.msra.mxu0 0
        %2162 = vmatprep.subr.bf16.mxu0 0
        %2163 = vmatpush1.bf16.msra.mxu0 0
        %2164 = vmatprep.subr.bf16.mxu0 0
        %2165 = vmatpush1.bf16.msra.mxu0 0
        %2166 = vmatprep.subr.bf16.mxu0 0
        %2167 = vmatpush1.bf16.msra.mxu0 0
        %2168 = vmatprep.subr.bf16.mxu0 0
        %2169 = vmatpush1.bf16.msra.mxu0 0
        %2170 = vmatprep.subr.bf16.mxu0 0
        %2171 = vmatpush1.bf16.msra.mxu0 0
        %2172 = vmatprep.subr.bf16.mxu0 0
        %2173 = vmatpush1.bf16.msra.mxu0 0
        %2174 = vmatprep.subr.bf16.mxu0 0
        %2175 = vmatpush1.bf16.msra.mxu0 0
        %2176 = vmatprep.subr.bf16.mxu0 0
        %2177 = vmatpush1.bf16.msra.mxu0 0
        %2178 = vmatprep.subr.bf16.mxu0 0
        %2179 = vmatpush1.bf16.msra.mxu0 0
        %2180 = vmatprep.mubr.bf16.mxu0 0
        %2181 = vmatmul.mubr.bf16.gmra.mrb[0].mxu0 %v2105
        %v2182 = vpop.f32.mrb[0].mxu0
        %v2183 = vadd.f32 0.0, %v2182
        %v2184 = vpop.f32.mrb[0].mxu0
        %v2185 = vadd.f32 0.0, %v2184
        %v2186 = vpop.f32.mrb[0].mxu0
        %v2187 = vpop.f32.mrb[0].mxu0
        %2188 = vdwg.mxu0
        %v2189 = vmax.f32 %v2142, 0.0
        %v2190 = vmax.f32 %v2144, 0.0
        %v2191 = vmax.f32 %v2183, 0.0
        %v2192 = vmax.f32 %v2185, 0.0
        %v2193 = vpack.c.bf16 %v2189, %v2189
        %v2194 = vpack.c.bf16 %v2190, %v2190
        %v2195 = vpack.c.bf16 %v2191, %v2191
        %v2196 = vpack.c.bf16 %v2192, %v2192
        %v2261 = vunpack.c.l.b16 %v1959
        %v2262 = vunpack.c.l.b16 %v1960
        %v2263 = vunpack.c.l.b16 %v1961
        %v2264 = vunpack.c.l.b16 %v1962
        %v2265 = vunpack.c.l.b16 %v1963
        %v2266 = vunpack.c.l.b16 %v1964
        %v2267 = vunpack.c.l.b16 %v1965
        %v2268 = vunpack.c.l.b16 %v1966
        %v2269 = vunpack.c.l.b16 %v1967
        %v2270 = vunpack.c.l.b16 %v1968
        %v2271 = vunpack.c.l.b16 %v1969
        %v2272 = vunpack.c.l.b16 %v1970
        %v2273 = vunpack.c.l.b16 %v1971
        %v2274 = vunpack.c.l.b16 %v1972
        %v2275 = vunpack.c.l.b16 %v1973
        %v2276 = vunpack.c.l.b16 %v1974
        %v2277 = vunpack.c.l.b16 %v1975
        %v2278 = vunpack.c.l.b16 %v1976
        %v2279 = vunpack.c.l.b16 %v1977
        %v2280 = vunpack.c.l.b16 %v1978
        %v2281 = vunpack.c.l.b16 %v1979
        %v2282 = vunpack.c.l.b16 %v1980
        %v2283 = vunpack.c.l.b16 %v1981
        %v2284 = vunpack.c.l.b16 %v1982
        %v2285 = vunpack.c.l.b16 %v1983
        %v2286 = vunpack.c.l.b16 %v1984
        %v2287 = vunpack.c.l.b16 %v1985
        %v2288 = vunpack.c.l.b16 %v1986
        %v2289 = vunpack.c.l.b16 %v1987
        %v2290 = vunpack.c.l.b16 %v1988
        %v2291 = vunpack.c.l.b16 %v1989
        %v2292 = vunpack.c.l.b16 %v1990
        %v2293 = vunpack.c.l.b16 %v1991
        %v2294 = vunpack.c.l.b16 %v1992
        %v2295 = vunpack.c.l.b16 %v1993
        %v2296 = vunpack.c.l.b16 %v1994
        %v2297 = vunpack.c.l.b16 %v1995
        %v2298 = vunpack.c.l.b16 %v1996
        %v2299 = vunpack.c.l.b16 %v1997
        %v2300 = vunpack.c.l.b16 %v1998
        %v2301 = vunpack.c.l.b16 %v1999
        %v2302 = vunpack.c.l.b16 %v2000
        %v2303 = vunpack.c.l.b16 %v2001
        %v2304 = vunpack.c.l.b16 %v2002
        %v2305 = vunpack.c.l.b16 %v2003
        %v2306 = vunpack.c.l.b16 %v2004
        %v2307 = vunpack.c.l.b16 %v2005
        %v2308 = vunpack.c.l.b16 %v2006
        %v2309 = vunpack.c.l.b16 %v2007
        %v2310 = vunpack.c.l.b16 %v2008
        %v2311 = vunpack.c.l.b16 %v2009
        %v2312 = vunpack.c.l.b16 %v2010
        %v2313 = vunpack.c.l.b16 %v2011
        %v2314 = vunpack.c.l.b16 %v2012
        %v2315 = vunpack.c.l.b16 %v2013
        %v2316 = vunpack.c.l.b16 %v2014
        %v2317 = vunpack.c.l.b16 %v2015
        %v2318 = vunpack.c.l.b16 %v2016
        %v2319 = vunpack.c.l.b16 %v2017
        %v2320 = vunpack.c.l.b16 %v2018
        %v2321 = vunpack.c.l.b16 %v2019
        %v2322 = vunpack.c.l.b16 %v2020
        %v2323 = vunpack.c.l.b16 %v2021
        %v2324 = vunpack.c.l.b16 %v2022
        %v2325 = vpack.c.b16 %v2262, %v2261
        %v2326 = vpack.c.b16 %v2264, %v2263
        %v2327 = vpack.c.b16 %v2266, %v2265
        %v2328 = vpack.c.b16 %v2268, %v2267
        %v2329 = vpack.c.b16 %v2270, %v2269
        %v2330 = vpack.c.b16 %v2272, %v2271
        %v2331 = vpack.c.b16 %v2274, %v2273
        %v2332 = vpack.c.b16 %v2276, %v2275
        %v2333 = vpack.c.b16 %v2278, %v2277
        %v2334 = vpack.c.b16 %v2280, %v2279
        %v2335 = vpack.c.b16 %v2282, %v2281
        %v2336 = vpack.c.b16 %v2284, %v2283
        %v2337 = vpack.c.b16 %v2286, %v2285
        %v2338 = vpack.c.b16 %v2288, %v2287
        %v2339 = vpack.c.b16 %v2290, %v2289
        %v2340 = vpack.c.b16 %v2292, %v2291
        %v2341 = vpack.c.b16 %v2294, %v2293
        %v2342 = vpack.c.b16 %v2296, %v2295
        %v2343 = vpack.c.b16 %v2298, %v2297
        %v2344 = vpack.c.b16 %v2300, %v2299
        %v2345 = vpack.c.b16 %v2302, %v2301
        %v2346 = vpack.c.b16 %v2304, %v2303
        %v2347 = vpack.c.b16 %v2306, %v2305
        %v2348 = vpack.c.b16 %v2308, %v2307
        %v2349 = vpack.c.b16 %v2310, %v2309
        %v2350 = vpack.c.b16 %v2312, %v2311
        %v2351 = vpack.c.b16 %v2314, %v2313
        %v2352 = vpack.c.b16 %v2316, %v2315
        %v2353 = vpack.c.b16 %v2318, %v2317
        %v2354 = vpack.c.b16 %v2320, %v2319
        %v2355 = vpack.c.b16 %v2322, %v2321
        %v2356 = vpack.c.b16 %v2324, %v2323
        %2389 = vmatprep.subr.bf16.mxu0 0
        %2390 = vmatpush1.bf16.msra.mxu0 %v2325
        %2391 = vmatprep.subr.bf16.mxu0 0
        %2392 = vmatpush1.bf16.msra.mxu0 %v2326
        %2393 = vmatprep.subr.bf16.mxu0 0
        %2394 = vmatpush1.bf16.msra.mxu0 %v2327
        %2395 = vmatprep.subr.bf16.mxu0 0
        %2396 = vmatpush1.bf16.msra.mxu0 %v2328
        %2397 = vmatprep.subr.bf16.mxu0 0
        %2398 = vmatpush1.bf16.msra.mxu0 %v2329
        %2399 = vmatprep.subr.bf16.mxu0 0
        %2400 = vmatpush1.bf16.msra.mxu0 %v2330
        %2401 = vmatprep.subr.bf16.mxu0 0
        %2402 = vmatpush1.bf16.msra.mxu0 %v2331
        %2403 = vmatprep.subr.bf16.mxu0 0
        %2404 = vmatpush1.bf16.msra.mxu0 %v2332
        %2405 = vmatprep.subr.bf16.mxu0 0
        %2406 = vmatpush1.bf16.msra.mxu0 %v2333
        %2407 = vmatprep.subr.bf16.mxu0 0
        %2408 = vmatpush1.bf16.msra.mxu0 %v2334
        %2409 = vmatprep.subr.bf16.mxu0 0
        %2410 = vmatpush1.bf16.msra.mxu0 %v2335
        %2411 = vmatprep.subr.bf16.mxu0 0
        %2412 = vmatpush1.bf16.msra.mxu0 %v2336
        %2413 = vmatprep.subr.bf16.mxu0 0
        %2414 = vmatpush1.bf16.msra.mxu0 %v2337
        %2415 = vmatprep.subr.bf16.mxu0 0
        %2416 = vmatpush1.bf16.msra.mxu0 %v2338
        %2417 = vmatprep.subr.bf16.mxu0 0
        %2418 = vmatpush1.bf16.msra.mxu0 %v2339
        %2419 = vmatprep.subr.bf16.mxu0 0
        %2420 = vmatpush1.bf16.msra.mxu0 %v2340
        %2421 = vmatprep.mubr.bf16.mxu0 %v2194
        %2422 = vmatmul.mubr.bf16.gmra.mrb[0].mxu0 %v2193
        %v2423 = vpop.f32.mrb[0].mxu0
        %v2424 = vadd.f32 %v1933, %v2423
        %v2425 = vpop.f32.mrb[0].mxu0
        %v2426 = vpop.f32.mrb[0].mxu0
        %v2427 = vpop.f32.mrb[0].mxu0
        %2428 = vdwg.mxu0
        %2429 = vmatprep.subr.bf16.mxu0 0
        %2430 = vmatpush1.bf16.msra.mxu0 %v2341
        %2431 = vmatprep.subr.bf16.mxu0 0
        %2432 = vmatpush1.bf16.msra.mxu0 %v2342
        %2433 = vmatprep.subr.bf16.mxu0 0
        %2434 = vmatpush1.bf16.msra.mxu0 %v2343
        %2435 = vmatprep.subr.bf16.mxu0 0
        %2436 = vmatpush1.bf16.msra.mxu0 %v2344
        %2437 = vmatprep.subr.bf16.mxu0 0
        %2438 = vmatpush1.bf16.msra.mxu0 %v2345
        %2439 = vmatprep.subr.bf16.mxu0 0
        %2440 = vmatpush1.bf16.msra.mxu0 %v2346
        %2441 = vmatprep.subr.bf16.mxu0 0
        %2442 = vmatpush1.bf16.msra.mxu0 %v2347
        %2443 = vmatprep.subr.bf16.mxu0 0
        %2444 = vmatpush1.bf16.msra.mxu0 %v2348
        %2445 = vmatprep.subr.bf16.mxu0 0
        %2446 = vmatpush1.bf16.msra.mxu0 %v2349
        %2447 = vmatprep.subr.bf16.mxu0 0
        %2448 = vmatpush1.bf16.msra.mxu0 %v2350
        %2449 = vmatprep.subr.bf16.mxu0 0
        %2450 = vmatpush1.bf16.msra.mxu0 %v2351
        %2451 = vmatprep.subr.bf16.mxu0 0
        %2452 = vmatpush1.bf16.msra.mxu0 %v2352
        %2453 = vmatprep.subr.bf16.mxu0 0
        %2454 = vmatpush1.bf16.msra.mxu0 %v2353
        %2455 = vmatprep.subr.bf16.mxu0 0
        %2456 = vmatpush1.bf16.msra.mxu0 %v2354
        %2457 = vmatprep.subr.bf16.mxu0 0
        %2458 = vmatpush1.bf16.msra.mxu0 %v2355
        %2459 = vmatprep.subr.bf16.mxu0 0
        %2460 = vmatpush1.bf16.msra.mxu0 %v2356
        %2461 = vmatprep.mubr.bf16.mxu0 %v2196
        %2462 = vmatmul.mubr.bf16.gmra.mrb[0].mxu0 %v2195
        %v2463 = vpop.f32.mrb[0].mxu0
        %v2464 = vadd.f32 %v2424, %v2463
        %v2465 = vpop.f32.mrb[0].mxu0
        %v2466 = vpop.f32.mrb[0].mxu0
        %v2467 = vpop.f32.mrb[0].mxu0
        %2468 = vdwg.mxu0
        %v2469 = vsel %vm525, %v2464, 0.0
        %2470 = vadd.xlane.f32.xlu0 %v2469
        %v2471 = vpop.xlane.xlu0 %2470
        %v2472 = vmul.f32 %v2471, %v1923
        %v2473 = vsub.f32 %v2464, %v2472
        %v2474 = vmul.f32 %v2473, %v2473
        %v2475 = vsel %vm525, %v2474, 0.0
        %2476 = vadd.xlane.f32.xlu0 %v2475
        %v2477 = vpop.xlane.xlu0 %2476
        %v2478 = vmul.f32 %v2477, %v1923
        %v2479 = vadd.f32 %v2478, 1e-05
        %v2480 = vrsqrt.pop %v2479
        %v2481 = vmul.f32 %v2473, %v2480
        %2482 = vst.msk [vmem:[#allocation2] sm:$0xff] %vm525, %v2481
        %2483 = vst.msk [vmem:[%s356] sm:$0xff] %vm525, %v2481
        %s2484 = sand.u32 %s225, 1
        %s2485 = scalar_lea.sflag [#allocation4], %s2484
        %s2486 = sand.u32 %s225, 1
        %s2487 = smul.addr %s2486, 8
        %s2488 = scalar_lea.vmem [#allocation3], %s2487
        %s2489 = sand.u32 %s253, 1
        %s2490 = scalar_lea.sflag [#allocation6], %s2489
        %s2491 = sand.u32 %s253, 1
        %s2492 = smul.addr %s2491, 32
        %s2493 = scalar_lea.vmem [#allocation5], %s2492
        // Predicated region
        $region57: #{tpu_custom_call.1} parent=51 // pred_check
          %p2494 = pneg %p235
        $region58: #{tpu_custom_call.1} parent=51 // pred_check_branch
          %2496 = sbr.rel (%p2494) target = $region60
        $region59: #{tpu_custom_call.1} parent=51 // pred_region
          %s2498 = ssub.s32 128, 128
          %2499 = vsyncadd %s2485, %s2498
          %s2500 = smul.addr %s31, 128
          %s2501 = scalar_lea.hbm %s8, %s2500
          %s2503 = sshll.u32 %s2488, 4
          %s2504 = int_to_ptr.vmem [resolvable:$true] %s2503
          %2506 = dma.vmem_to_hbm [thread:$0]  %s2504, 128, %s2501, %s2485
        $region60: #{tpu_custom_call.1} parent=51 // pred_fallthru
          _
        // Predicated region
        $region61: #{tpu_custom_call.1} parent=51 // pred_check
          %p2507 = pneg %p263
        $region62: #{tpu_custom_call.1} parent=51 // pred_check_branch
          %2509 = sbr.rel (%p2507) target = $region64
        $region63: #{tpu_custom_call.1} parent=51 // pred_region
          %s2511 = ssub.s32 512, 512
          %2512 = vsyncadd %s2490, %s2511
          %s2513 = smul.addr %s31, 4
          %s2514 = smul.addr %s32, 8
          %s2515 = sadd.s32 %s2513, %s2514
          %s2516 = smul.addr %s2515, 128
          %s2517 = scalar_lea.hbm %s9, %s2516
          %s2518 = sshll.u32 %s2493, 4
          %s2519 = int_to_ptr.vmem [resolvable:$true] %s2518
          %2524 = dma.vmem_to_hbm [thread:$0]  %s2519, 512, %s2517, %s2490, 128, 128, 8
        $region64: #{tpu_custom_call.1} parent=51 // pred_fallthru
          _
      $region52: #{tpu_custom_call.1} parent=5 // pred_fallthru
        _
      %p2525 = scmp.le.s32.totalorder 2, %s22
      // Predicated region
      $region65: #{tpu_custom_call.1} parent=5 // pred_check
        %p2526 = pneg %p2525
      $region66: #{tpu_custom_call.1} parent=5 // pred_check_branch
        %2528 = sbr.rel (%p2526) target = $region68
      $region67: #{tpu_custom_call.1} parent=5 // pred_region
        %s2529 = ssub.s32 %s22, 2
        // Predicated region
        $region69: #{tpu_custom_call.1} parent=67 // pred_check
          %p2530 = pneg %p241
        $region70: #{tpu_custom_call.1} parent=67 // pred_check_branch
          %2532 = sbr.rel (%p2530) target = $region72
        $region71: #{tpu_custom_call.1} parent=67 // pred_region
          %s2533 = sand.u32 %s226, 1
          %s2534 = scalar_lea.sflag [#allocation4], %s2533
          %s2535 = sand.u32 %s226, 1
          %s2536 = smul.addr %s2535, 8
          %s2537 = scalar_lea.vmem [#allocation3], %s2536
          %2538 = dma.done %s2534, 128
        $region72: #{tpu_custom_call.1} parent=67 // pred_fallthru
          _
        // Predicated region
        $region73: #{tpu_custom_call.1} parent=67 // pred_check
          %p2539 = pneg %p269
        $region74: #{tpu_custom_call.1} parent=67 // pred_check_branch
          %2541 = sbr.rel (%p2539) target = $region76
        $region75: #{tpu_custom_call.1} parent=67 // pred_region
          %s2542 = sand.u32 %s254, 1
          %s2543 = scalar_lea.sflag [#allocation6], %s2542
          %s2544 = sand.u32 %s254, 1
          %s2545 = smul.addr %s2544, 32
          %s2546 = scalar_lea.vmem [#allocation5], %s2545
          %2547 = dma.done %s2543, 512
        $region76: #{tpu_custom_call.1} parent=67 // pred_fallthru
          _
      $region68: #{tpu_custom_call.1} parent=5 // pred_fallthru
        _
    $region6: #{tpu_custom_call.1} parent=1 // loop_footer
      %s26 = sadd.s32 1, %s22
    $region7: #{tpu_custom_call.1} parent=1 // loop_footer_branch
      %21 = sbr.rel target = $region3
    $region8: #{tpu_custom_call.1} parent=1 // loop_exit
      _
    %2548 = vsyncpa [#allocation4], 1
    %s2549 = scalar_lea.sflag [#allocation4], 1
    %2550 = vsyncpa %s2549, 1
    %2551 = vsyncpa [#allocation6], 1
    %s2552 = scalar_lea.sflag [#allocation6], 1
    %2553 = vsyncpa %s2552, 1

</llo_original>
